<compile_context>
chip_gen: v6e
topology: v6e:2x2x1
jax: 0.10.0
libtpu: 0.0.40
codegen_flags: <defaults>
</compile_context>

<pallas_src>
import math

import jax
import jax.numpy as jnp
from jax import lax
from jax.experimental import pallas as pl
from jax.experimental.pallas import tpu as pltpu


def _round_up(x: int, m: int) -> int:
    return (x + m - 1) // m * m


def _choose_blocks(n: int, block_m_max: int = 512, block_n_max: int = 256,
                   ensure_two_row_tiles: bool = True):
    """Pick (block_m, block_n, n_pad): minimize padding first, then maximize block_m."""
    block_m_max = max(128, _round_up(int(block_m_max), 128))
    best = None
    for bm in range(block_m_max, 0, -128):          # 512, 384, 256, 128 (by default)
        n_pad = _round_up(n, bm)
        key = (n_pad, -bm)                          # least padding, then biggest tile
        if best is None or key < best[0]:
            best = (key, bm, n_pad)
    _, bm, n_pad = best
    # v7x megacore: keep >= 2 row tiles so the "parallel" axis spans both TensorCores
    # (no measurable cost on the single-TC v5e/v6e at these sizes).
    if ensure_two_row_tiles and n_pad >= 256 and n_pad // bm < 2:
        for cand in range(bm, 0, -128):
            if cand <= n_pad // 2 and n_pad % cand == 0:
                bm = cand
                break
    bn = 256 if (block_n_max >= 256 and n_pad % 256 == 0) else 128
    bn = min(bn, n_pad)
    return bm, bn, n_pad


def _make_supcon_kernel(*, n_valid: int, block_m: int, block_n: int, loss_scale: float):
    neg_big = -1e30   # not -inf: avoids inf-inf NaNs on fully-masked (padded) rows

    def kernel(fa_ref, fc_ref, la_ref, lc_ref, cnt_ref, self_ref, out_ref,
               m_sc, l_sc, sm_sc):
        i = pl.program_id(0)    # anchor-row tile ("parallel")
        k = pl.program_id(1)    # contrast-col tile (online reduction, "arbitrary")

        @pl.when(k == 0)
        def _init():
            m_sc[...] = jnp.full_like(m_sc, neg_big)
            l_sc[...] = jnp.zeros_like(l_sc)
            sm_sc[...] = jnp.zeros_like(sm_sc)

        # logits tile = <anchor, contrast>; temperature is pre-folded into the features
        # and the MXU is fed without an explicit transpose (contract last dims of both).
        logits = lax.dot_general(
            fa_ref[...], fc_ref[...],
            dimension_numbers=(((1,), (1,)), ((), ())),
            preferred_element_type=jnp.float32)                     # [bm, bn] f32

        # Single masked-logits tensor used for BOTH the running max and the exp sum;
        # the row-max shift cancels exactly in lse = m + log(l).  Requires N >= 2.
        row_ids = i * block_m + lax.broadcasted_iota(jnp.int32, (block_m, 1), 0)
        col_ids = k * block_n + lax.broadcasted_iota(jnp.int32, (1, block_n), 1)
        allowed = (row_ids != col_ids) & (col_ids < n_valid)        # no diag / padding
        masked = jnp.where(allowed, logits, neg_big)
        # TODO(synk): a lax.cond branch for tiles that provably contain neither the
        # diagonal nor padded columns would drop the iota compares from most grid steps.

        m_prev = m_sc[...]
        m_new = jnp.maximum(m_prev, jnp.max(masked, axis=1, keepdims=True))
        l_sc[...] = (l_sc[...] * jnp.exp(m_prev - m_new)
                     + jnp.sum(jnp.exp(masked - m_new), axis=1, keepdims=True))
        m_sc[...] = m_new

        # Positive-pair logit sum: plain same-id select.  No logits_mask AND is needed:
        # the diagonal term (always same id) is removed in finalize via the precomputed
        # self-logit, and zero-padded columns contribute exactly-zero logits.
        sm_sc[...] = sm_sc[...] + jnp.sum(
            jnp.where(la_ref[...] == lc_ref[...], logits, 0.0), axis=1, keepdims=True)

        @pl.when(k == pl.num_programs(1) - 1)
        def _finalize():
            cnt = cnt_ref[...]                                # positives per anchor
            mpp = jnp.where(cnt < 1e-6, 1.0, cnt)             # PyTorch's clamp
            lse = m_sc[...] + jnp.log(l_sc[...])              # log sum_{j!=i} exp(A_ij)
            pos_sum = sm_sc[...] - self_ref[...]              # drop diagonal A_ii
            mean_log_prob_pos = (pos_sum - cnt * lse) / mpp
            out_ref[...] = (loss_scale * mean_log_prob_pos).astype(out_ref.dtype)

    return kernel


def supcon_loss(features, labels=None, mask=None, temperature=0.07,
                contrast_mode='all', base_temperature=0.07,
                block_m=512, block_n=256, mxu_dtype=jnp.bfloat16,
                ensure_two_row_tiles=True):
    """JAX/Pallas equivalent of SupConLoss.forward (contrast_mode='all').

    features : [bsz, n_views, ...]   labels : optional [bsz] integer labels
    mxu_dtype: bf16 by default (f32 accumulation); pass jnp.float32 for exact numerics.
    Requires bsz * n_views >= 2 (the N == 1 case is degenerate in the reference too).
    """
    if features.ndim < 3:
        raise ValueError('`features` needs to be [bsz, n_views, ...]')
    if features.ndim > 3:
        features = features.reshape(features.shape[0], features.shape[1], -1)
    bsz, n_views, dim = features.shape

    if labels is not None and mask is not None:
        raise ValueError('Cannot define both `labels` and `mask`')
    if contrast_mode == 'one':
        # TODO(synk): contrast_mode='one' (anchor = features[:, 0]) not implemented.
        raise NotImplementedError("contrast_mode='one' not implemented")
    if contrast_mode != 'all':
        raise ValueError('Unknown mode: {}'.format(contrast_mode))

    if labels is None and mask is None:
        # SimCLR: positives = other views of the same sample -> ids are sample indices.
        sample_ids = jnp.arange(bsz, dtype=jnp.int32)
    elif labels is not None:
        labels = labels.reshape(-1)
        if labels.shape[0] != bsz:
            raise ValueError('Num of labels does not match num of features')
        sample_ids = labels.astype(jnp.int32)
    else:
        # TODO(synk): an arbitrary (possibly asymmetric) user mask cannot be expressed
        # as an in-kernel label-equality test; pass `labels` instead.
        raise NotImplementedError('explicit `mask` not supported by the tiled kernel')

    N = n_views * bsz
    # contrast_feature = cat(unbind(features, dim=1), dim=0): row r = v*bsz + b.
    cf = jnp.transpose(features, (1, 0, 2)).reshape(N, dim).astype(jnp.float32)
    # Fold the temperature into the features once (anchor == contrast => dot picks 1/T).
    cf = cf * jnp.float32(1.0 / math.sqrt(float(temperature)))

    bm, bn, n_pad = _choose_blocks(N, block_m, block_n, ensure_two_row_tiles)
    d_pad = _round_up(dim, 128)

    cf_p = jnp.zeros((n_pad, d_pad), mxu_dtype).at[:N, :dim].set(cf.astype(mxu_dtype))

    ids = jnp.tile(sample_ids, n_views)                                  # [N]
    ids_p = jnp.full((n_pad,), -1, jnp.int32).at[:N].set(ids)
    ids_row = ids_p.reshape(n_pad, 1)
    ids_col = ids_p.reshape(1, n_pad)

    # Positives count per anchor: n_views * (#samples with same label) - 1 (self).
    per_sample = jnp.sum(sample_ids[:, None] == sample_ids[None, :],
                         axis=1).astype(jnp.float32)                     # [bsz]
    cnt = jnp.tile(n_views * per_sample - 1.0, n_views)                  # [N]
    cnt_p = jnp.zeros((n_pad, 1), jnp.float32).at[:N, 0].set(cnt)

    # Diagonal logit A_ii, computed from the SAME quantized/scaled features the kernel
    # sees, so the finalize subtraction cancels the diagonal term of the positive sum.
    cf_f32 = cf_p.astype(jnp.float32)
    self_p = jnp.sum(cf_f32 * cf_f32, axis=1, keepdims=True)             # [n_pad, 1]

    kernel = _make_supcon_kernel(
        n_valid=N, block_m=bm, block_n=bn,
        loss_scale=float(-(temperature / base_temperature)))

    # VMEM budget: double-buffered feature tiles + small per-row blocks + scratch.
    itemsize = jnp.dtype(mxu_dtype).itemsize
    vmem_need = (2 * (bm + bn) * d_pad * itemsize
                 + 6 * bm * 4 + 2 * bn * 4 + 3 * bm * 4 + bm * bn * 4)
    cp_kwargs = dict(dimension_semantics=("parallel", "arbitrary"))
    if vmem_need > 30 * 1024 * 1024:
        # TODO(synk): for very large feature dims add a 3rd grid axis over d with an
        # f32 logits accumulator instead of loading the full d_pad slab per step.
        cp_kwargs["vmem_limit_bytes"] = int(min(2 * vmem_need, 64 * 1024 * 1024))

    loss_rows = pl.pallas_call(
        kernel,
        out_shape=jax.ShapeDtypeStruct((n_pad, 1), jnp.float32),
        grid_spec=pltpu.PrefetchScalarGridSpec(
            num_scalar_prefetch=0,
            grid=(n_pad // bm, n_pad // bn),
            in_specs=[
                pl.BlockSpec((bm, d_pad), lambda i, k: (i, 0)),   # anchor rows
                pl.BlockSpec((bn, d_pad), lambda i, k: (k, 0)),   # contrast cols
                pl.BlockSpec((bm, 1), lambda i, k: (i, 0)),       # row ids
                pl.BlockSpec((1, bn), lambda i, k: (0, k)),       # col ids
                pl.BlockSpec((bm, 1), lambda i, k: (i, 0)),       # positives count
                pl.BlockSpec((bm, 1), lambda i, k: (i, 0)),       # diagonal logit A_ii
            ],
            out_specs=pl.BlockSpec((bm, 1), lambda i, k: (i, 0)),
            scratch_shapes=[pltpu.VMEM((bm, 1), jnp.float32) for _ in range(3)],
        ),
        compiler_params=pltpu.CompilerParams(**cp_kwargs),
    )(cf_p, cf_p, ids_row, ids_col, cnt_p, self_p)

    # loss.view(anchor_count, batch_size).mean() == mean over all N real anchors.
    return jnp.sum(loss_rows[:N, 0]) / N


def supcon_loss_ref(features, labels=None, temperature=0.07, base_temperature=0.07):
    """Pure-JAX reference mirroring the PyTorch forward (for sanity checking)."""
    bsz, n_views, dim = features.shape
    if labels is None:
        base_mask = jnp.eye(bsz, dtype=jnp.float32)
    else:
        labels = labels.reshape(-1, 1)
        base_mask = (labels == labels.T).astype(jnp.float32)
    cf = jnp.transpose(features, (1, 0, 2)).reshape(n_views * bsz, dim).astype(jnp.float32)
    logits = jnp.matmul(cf, cf.T, precision=lax.Precision.HIGHEST) / temperature
    logits = logits - jnp.max(logits, axis=1, keepdims=True)
    N = n_views * bsz
    mask = jnp.tile(base_mask, (n_views, n_views))
    logits_mask = 1.0 - jnp.eye(N, dtype=jnp.float32)
    mask = mask * logits_mask
    exp_logits = jnp.exp(logits) * logits_mask
    log_prob = logits - jnp.log(exp_logits.sum(1, keepdims=True))
    mpp = mask.sum(1)
    mpp = jnp.where(mpp < 1e-6, 1.0, mpp)
    mlpp = (mask * log_prob).sum(1) / mpp
    loss = -(temperature / base_temperature) * mlpp
    return loss.mean()


if __name__ == "__main__":
    key = jax.random.PRNGKey(0)
    k1, k2, k3, k4, k5, k6 = jax.random.split(key, 6)

    # Case 1: tiny single-tile case with padded feature dim; labels + SimCLR paths.
    bsz, n_views, dim = 8, 2, 32
    feats = jax.random.normal(k1, (bsz, n_views, dim), dtype=jnp.float32)
    feats = feats / jnp.linalg.norm(feats, axis=-1, keepdims=True)
    labels = jax.random.randint(k2, (bsz,), 0, 4)

    ref = supcon_loss_ref(feats, labels=labels)
    out_bf16 = jax.block_until_ready(supcon_loss(feats, labels=labels))
    assert jnp.allclose(out_bf16, ref, rtol=5e-2, atol=1e-1), (out_bf16, ref)
    out_f32 = jax.block_until_ready(
        supcon_loss(feats, labels=labels, mxu_dtype=jnp.float32))
    assert jnp.allclose(out_f32, ref, rtol=1e-2, atol=1e-2), (out_f32, ref)

    ref_u = supcon_loss_ref(feats)
    out_u = jax.block_until_ready(supcon_loss(feats))
    assert jnp.allclose(out_u, ref_u, rtol=5e-2, atol=1e-1), (out_u, ref_u)

    # Case 2: multi-tile grid with row/col/feature padding (N=320 -> n_pad=384, 3x3).
    bsz2, n_views2, dim2 = 160, 2, 72
    feats2 = jax.random.normal(k3, (bsz2, n_views2, dim2), dtype=jnp.float32)
    feats2 = feats2 / jnp.linalg.norm(feats2, axis=-1, keepdims=True)
    labels2 = jax.random.randint(k4, (bsz2,), 0, 5)

    ref2 = supcon_loss_ref(feats2, labels=labels2)
    out2_f32 = jax.block_until_ready(
        supcon_loss(feats2, labels=labels2, mxu_dtype=jnp.float32))
    assert jnp.allclose(out2_f32, ref2, rtol=1e-2, atol=1e-2), (out2_f32, ref2)
    out2_bf16 = jax.block_until_ready(supcon_loss(feats2, labels=labels2))
    assert jnp.allclose(out2_bf16, ref2, rtol=5e-2, atol=1e-1), (out2_bf16, ref2)

    # Case 3: rectangular tiles (block_m=512, block_n=256), no row padding (N=1024).
    bsz3, n_views3, dim3 = 512, 2, 40
    feats3 = jax.random.normal(k5, (bsz3, n_views3, dim3), dtype=jnp.float32)
    feats3 = feats3 / jnp.linalg.norm(feats3, axis=-1, keepdims=True)
    labels3 = jax.random.randint(k6, (bsz3,), 0, 10)

    ref3 = supcon_loss_ref(feats3, labels=labels3)
    out3_f32 = jax.block_until_ready(
        supcon_loss(feats3, labels=labels3, mxu_dtype=jnp.float32))
    assert jnp.allclose(out3_f32, ref3, rtol=1e-2, atol=1e-2), (out3_f32, ref3)

    print("KERNEL_OK")
</pallas_src>

<mosaic_0001>
module attributes {stable_mosaic.version = 11 : i64} {
  func.func @kernel(%arg0: i32, %arg1: i32, %arg2: memref<128x128xbf16, #tpu.memory_space<vmem>>, %arg3: memref<128x128xbf16, #tpu.memory_space<vmem>>, %arg4: memref<128x1xi32, #tpu.memory_space<vmem>>, %arg5: memref<1x128xi32, #tpu.memory_space<vmem>>, %arg6: memref<128x1xf32, #tpu.memory_space<vmem>>, %arg7: memref<128x1xf32, #tpu.memory_space<vmem>>, %arg8: memref<128x1xf32, #tpu.memory_space<vmem>>, %arg9: memref<128x1xf32, #tpu.memory_space<vmem>>, %arg10: memref<128x1xf32, #tpu.memory_space<vmem>>, %arg11: memref<128x1xf32, #tpu.memory_space<vmem>>) attributes {dimension_semantics = [#tpu.dimension_semantics<parallel>, #tpu.dimension_semantics<arbitrary>], iteration_bounds = array<i64: 1, 1>, scalar_prefetch = 0 : i64, scratch_operands = 3 : i64, tpu.core_type = #tpu.core_type<tc>, window_params = [{transform_indices = @transform_0, window_bounds = array<i64: 128, 128>}, {transform_indices = @transform_1, window_bounds = array<i64: 128, 128>}, {transform_indices = @transform_2, window_bounds = array<i64: 128, 1>}, {transform_indices = @transform_3, window_bounds = array<i64: 1, 128>}, {transform_indices = @transform_4, window_bounds = array<i64: 128, 1>}, {transform_indices = @transform_5, window_bounds = array<i64: 128, 1>}, {transform_indices = @transform_6, window_bounds = array<i64: 128, 1>}]} {
    %c0_i32 = arith.constant 0 : i32
    %0 = arith.cmpi eq, %arg1, %c0_i32 : i32
    %1 = arith.extui %0 : i1 to i32
    %c0_i32_0 = arith.constant 0 : i32
    %2 = arith.cmpi ne, %1, %c0_i32_0 : i32
    scf.if %2 {
      %cst_28 = arith.constant -1.000000e+30 : f32
      %54 = vector.broadcast %cst_28 : f32 to vector<128x1xf32>
      %c0_29 = arith.constant 0 : index
      %c0_30 = arith.constant 0 : index
      %55 = vector.load %arg9[%c0_29, %c0_30] : memref<128x1xf32, #tpu.memory_space<vmem>>, vector<128x1xf32>
      tpu.vector_store %arg9[%c0_29, %c0_30], %54 {strides = array<i32>} : memref<128x1xf32, #tpu.memory_space<vmem>>, vector<128x1xf32>,
      %cst_31 = arith.constant 0.000000e+00 : f32
      %56 = vector.broadcast %cst_31 : f32 to vector<128x1xf32>
      %c0_32 = arith.constant 0 : index
      %c0_33 = arith.constant 0 : index
      %57 = vector.load %arg10[%c0_32, %c0_33] : memref<128x1xf32, #tpu.memory_space<vmem>>, vector<128x1xf32>
      tpu.vector_store %arg10[%c0_32, %c0_33], %56 {strides = array<i32>} : memref<128x1xf32, #tpu.memory_space<vmem>>, vector<128x1xf32>,
      %cst_34 = arith.constant 0.000000e+00 : f32
      %58 = vector.broadcast %cst_34 : f32 to vector<128x1xf32>
      %c0_35 = arith.constant 0 : index
      %c0_36 = arith.constant 0 : index
      %59 = vector.load %arg11[%c0_35, %c0_36] : memref<128x1xf32, #tpu.memory_space<vmem>>, vector<128x1xf32>
      tpu.vector_store %arg11[%c0_35, %c0_36], %58 {strides = array<i32>} : memref<128x1xf32, #tpu.memory_space<vmem>>, vector<128x1xf32>,
    } else {
    }
    %c0 = arith.constant 0 : index
    %c0_1 = arith.constant 0 : index
    %3 = vector.load %arg2[%c0, %c0_1] : memref<128x128xbf16, #tpu.memory_space<vmem>>, vector<128x128xbf16>
    %c0_2 = arith.constant 0 : index
    %c0_3 = arith.constant 0 : index
    %4 = vector.load %arg3[%c0_2, %c0_3] : memref<128x128xbf16, #tpu.memory_space<vmem>>, vector<128x128xbf16>
    %cst = arith.constant dense<0.000000e+00> : vector<128x128xf32>
    %5 = tpu.matmul %3, %4, %cst {dimension_numbers = #tpu.dot_dimension_numbers<[1], [1], [0], [0], [0, 0, 1, 0], [], []>} : vector<128x128xbf16>, vector<128x128xbf16>, vector<128x128xf32> -> vector<128x128xf32>
    %c128_i32 = arith.constant 128 : i32
    %6 = arith.muli %arg0, %c128_i32 : i32
    %7 = tpu.iota {dimensions = array<i32: 0>} : vector<128x1xi32>
    %8 = vector.broadcast %6 : i32 to vector<128x1xi32>
    %9 = arith.addi %8, %7 : vector<128x1xi32>
    %c128_i32_4 = arith.constant 128 : i32
    %10 = arith.muli %arg1, %c128_i32_4 : i32
    %11 = tpu.iota {dimensions = array<i32: 1>} : vector<1x128xi32>
    %12 = vector.broadcast %10 : i32 to vector<1x128xi32>
    %13 = arith.addi %12, %11 : vector<1x128xi32>
    %14 = vector.broadcast %9 : vector<128x1xi32> to vector<128x128xi32>
    %15 = vector.broadcast %13 : vector<1x128xi32> to vector<128x128xi32>
    %16 = arith.cmpi ne, %14, %15 : vector<128x128xi32>
    %c16_i32 = arith.constant 16 : i32
    %17 = vector.broadcast %c16_i32 : i32 to vector<1x128xi32>
    %18 = arith.cmpi slt, %13, %17 : vector<1x128xi32>
    %19 = vector.broadcast %18 : vector<1x128xi1> to vector<128x128xi1>
    %20 = arith.andi %16, %19 : vector<128x128xi1>
    %cst_5 = arith.constant -1.000000e+30 : f32
    %21 = vector.broadcast %cst_5 : f32 to vector<128x128xf32>
    %22 = arith.select %20, %5, %21 : vector<128x128xi1>, vector<128x128xf32>
    %c0_6 = arith.constant 0 : index
    %c0_7 = arith.constant 0 : index
    %23 = vector.load %arg9[%c0_6, %c0_7] : memref<128x1xf32, #tpu.memory_space<vmem>>, vector<128x1xf32>
    %cst_8 = arith.constant dense<0xFF800000> : vector<128xf32>
    %24 = vector.multi_reduction <maximumf>, %22, %cst_8 [1] : vector<128x128xf32> to vector<128xf32>
    %25 = vector.shape_cast %24 : vector<128xf32> to vector<128x1xf32>
    %26 = arith.maximumf %23, %25 : vector<128x1xf32>
    %c0_9 = arith.constant 0 : index
    %c0_10 = arith.constant 0 : index
    %27 = vector.load %arg10[%c0_9, %c0_10] : memref<128x1xf32, #tpu.memory_space<vmem>>, vector<128x1xf32>
    %28 = arith.subf %23, %26 : vector<128x1xf32>
    %29 = math.exp %28 : vector<128x1xf32>
    %30 = arith.mulf %27, %29 : vector<128x1xf32>
    %31 = vector.broadcast %26 : vector<128x1xf32> to vector<128x128xf32>
    %32 = arith.subf %22, %31 : vector<128x128xf32>
    %33 = math.exp %32 : vector<128x128xf32>
    %cst_11 = arith.constant dense<0.000000e+00> : vector<128xf32>
    %34 = vector.multi_reduction <add>, %33, %cst_11 [1] : vector<128x128xf32> to vector<128xf32>
    %35 = vector.shape_cast %34 : vector<128xf32> to vector<128x1xf32>
    %36 = arith.addf %30, %35 : vector<128x1xf32>
    %c0_12 = arith.constant 0 : index
    %c0_13 = arith.constant 0 : index
    %37 = vector.load %arg10[%c0_12, %c0_13] : memref<128x1xf32, #tpu.memory_space<vmem>>, vector<128x1xf32>
    tpu.vector_store %arg10[%c0_12, %c0_13], %36 {strides = array<i32>} : memref<128x1xf32, #tpu.memory_space<vmem>>, vector<128x1xf32>,
    %c0_14 = arith.constant 0 : index
    %c0_15 = arith.constant 0 : index
    %38 = vector.load %arg9[%c0_14, %c0_15] : memref<128x1xf32, #tpu.memory_space<vmem>>, vector<128x1xf32>
    tpu.vector_store %arg9[%c0_14, %c0_15], %26 {strides = array<i32>} : memref<128x1xf32, #tpu.memory_space<vmem>>, vector<128x1xf32>,
    %c0_16 = arith.constant 0 : index
    %c0_17 = arith.constant 0 : index
    %39 = vector.load %arg11[%c0_16, %c0_17] : memref<128x1xf32, #tpu.memory_space<vmem>>, vector<128x1xf32>
    %c0_18 = arith.constant 0 : index
    %c0_19 = arith.constant 0 : index
    %40 = vector.load %arg4[%c0_18, %c0_19] : memref<128x1xi32, #tpu.memory_space<vmem>>, vector<128x1xi32>
    %c0_20 = arith.constant 0 : index
    %c0_21 = arith.constant 0 : index
    %41 = vector.load %arg5[%c0_20, %c0_21] : memref<1x128xi32, #tpu.memory_space<vmem>>, vector<1x128xi32>
    %42 = vector.broadcast %40 : vector<128x1xi32> to vector<128x128xi32>
    %43 = vector.broadcast %41 : vector<1x128xi32> to vector<128x128xi32>
    %44 = arith.cmpi eq, %42, %43 : vector<128x128xi32>
    %cst_22 = arith.constant 0.000000e+00 : f32
    %45 = vector.broadcast %cst_22 : f32 to vector<128x128xf32>
    %46 = arith.select %44, %5, %45 : vector<128x128xi1>, vector<128x128xf32>
    %cst_23 = arith.constant dense<0.000000e+00> : vector<128xf32>
    %47 = vector.multi_reduction <add>, %46, %cst_23 [1] : vector<128x128xf32> to vector<128xf32>
    %48 = vector.shape_cast %47 : vector<128xf32> to vector<128x1xf32>
    %49 = arith.addf %39, %48 : vector<128x1xf32>
    %c0_24 = arith.constant 0 : index
    %c0_25 = arith.constant 0 : index
    %50 = vector.load %arg11[%c0_24, %c0_25] : memref<128x1xf32, #tpu.memory_space<vmem>>, vector<128x1xf32>
    tpu.vector_store %arg11[%c0_24, %c0_25], %49 {strides = array<i32>} : memref<128x1xf32, #tpu.memory_space<vmem>>, vector<128x1xf32>,
    %c0_i32_26 = arith.constant 0 : i32
    %51 = arith.cmpi eq, %arg1, %c0_i32_26 : i32
    %52 = arith.extui %51 : i1 to i32
    %c0_i32_27 = arith.constant 0 : i32
    %53 = arith.cmpi ne, %52, %c0_i32_27 : i32
    scf.if %53 {
      %c0_28 = arith.constant 0 : index
      %c0_29 = arith.constant 0 : index
      %54 = vector.load %arg6[%c0_28, %c0_29] : memref<128x1xf32, #tpu.memory_space<vmem>>, vector<128x1xf32>
      %cst_30 = arith.constant 9.99999997E-7 : f32
      %55 = vector.broadcast %cst_30 : f32 to vector<128x1xf32>
      %56 = arith.cmpf olt, %54, %55 : vector<128x1xf32>
      %cst_31 = arith.constant 1.000000e+00 : f32
      %57 = vector.broadcast %cst_31 : f32 to vector<128x1xf32>
      %58 = arith.select %56, %57, %54 : vector<128x1xi1>, vector<128x1xf32>
      %c0_32 = arith.constant 0 : index
      %c0_33 = arith.constant 0 : index
      %59 = vector.load %arg9[%c0_32, %c0_33] : memref<128x1xf32, #tpu.memory_space<vmem>>, vector<128x1xf32>
      %c0_34 = arith.constant 0 : index
      %c0_35 = arith.constant 0 : index
      %60 = vector.load %arg10[%c0_34, %c0_35] : memref<128x1xf32, #tpu.memory_space<vmem>>, vector<128x1xf32>
      %61 = math.log %60 : vector<128x1xf32>
      %62 = arith.addf %59, %61 : vector<128x1xf32>
      %c0_36 = arith.constant 0 : index
      %c0_37 = arith.constant 0 : index
      %63 = vector.load %arg11[%c0_36, %c0_37] : memref<128x1xf32, #tpu.memory_space<vmem>>, vector<128x1xf32>
      %c0_38 = arith.constant 0 : index
      %c0_39 = arith.constant 0 : index
      %64 = vector.load %arg7[%c0_38, %c0_39] : memref<128x1xf32, #tpu.memory_space<vmem>>, vector<128x1xf32>
      %65 = arith.subf %63, %64 : vector<128x1xf32>
      %66 = arith.mulf %54, %62 : vector<128x1xf32>
      %67 = arith.subf %65, %66 : vector<128x1xf32>
      %68 = arith.divf %67, %58 : vector<128x1xf32>
      %cst_40 = arith.constant -1.000000e+00 : f32
      %69 = vector.broadcast %cst_40 : f32 to vector<128x1xf32>
      %70 = arith.mulf %69, %68 : vector<128x1xf32>
      %c0_41 = arith.constant 0 : index
      %c0_42 = arith.constant 0 : index
      %71 = vector.load %arg8[%c0_41, %c0_42] : memref<128x1xf32, #tpu.memory_space<vmem>>, vector<128x1xf32>
      tpu.vector_store %arg8[%c0_41, %c0_42], %70 {strides = array<i32>} : memref<128x1xf32, #tpu.memory_space<vmem>>, vector<128x1xf32>,
    } else {
    }
    return
  }
  func.func @transform_0(%arg0: i32, %arg1: i32) -> (i32, i32) {
    %c0_i32 = arith.constant 0 : i32
    %c0_i32_0 = arith.constant 0 : i32
    return %arg0, %c0_i32 : i32, i32
  }
  func.func @transform_1(%arg0: i32, %arg1: i32) -> (i32, i32) {
    %c0_i32 = arith.constant 0 : i32
    %c0_i32_0 = arith.constant 0 : i32
    return %arg1, %c0_i32 : i32, i32
  }
  func.func @transform_2(%arg0: i32, %arg1: i32) -> (i32, i32) {
    %c0_i32 = arith.constant 0 : i32
    %c0_i32_0 = arith.constant 0 : i32
    return %arg0, %c0_i32 : i32, i32
  }
  func.func @transform_3(%arg0: i32, %arg1: i32) -> (i32, i32) {
    %c0_i32 = arith.constant 0 : i32
    %c0_i32_0 = arith.constant 0 : i32
    return %c0_i32, %arg1 : i32, i32
  }
  func.func @transform_4(%arg0: i32, %arg1: i32) -> (i32, i32) {
    %c0_i32 = arith.constant 0 : i32
    %c0_i32_0 = arith.constant 0 : i32
    return %arg0, %c0_i32 : i32, i32
  }
  func.func @transform_5(%arg0: i32, %arg1: i32) -> (i32, i32) {
    %c0_i32 = arith.constant 0 : i32
    %c0_i32_0 = arith.constant 0 : i32
    return %arg0, %c0_i32 : i32, i32
  }
  func.func @transform_6(%arg0: i32, %arg1: i32) -> (i32, i32) {
    %c0_i32 = arith.constant 0 : i32
    %c0_i32_0 = arith.constant 0 : i32
    return %arg0, %c0_i32 : i32, i32
  }
}

</mosaic_0001>

<llo_original>
// kernel: tpu_custom_call.1
$region0: #{tpu_custom_call.1}
  #allocation0 [shape = 'u32[]', space=smem, size = 0x4, offset = 0x4, fixed_abs, tag = 'smem constant byte address 0x4 - core index']
  #allocation1 [shape = 'u32[144,128]{1,0:T(1,128)}', space=vmem, size = 0x12000, scoped, tag = 'internal scratch']
  #allocation2 [shape = 'f32[128,1]{1,0:T(8,128)}', space=vmem, size = 0x10000, scoped, tag = 'scratch operand']
  #allocation3 [shape = 'f32[128,1]{1,0:T(8,128)}', space=vmem, size = 0x10000, scoped, tag = 'scratch operand']
  #allocation4 [shape = 'f32[128,1]{1,0:T(8,128)}', space=vmem, size = 0x10000, scoped, tag = 'scratch operand']
  %s0 = inlined_call_operand.vmem [shape: bf16[128,128], index: 0, kind: input, shape index: {}]
  %s1 = inlined_call_operand.vmem [shape: bf16[128,128], index: 1, kind: input, shape index: {}]
  %s2 = inlined_call_operand.vmem [shape: s32[128,1], index: 2, kind: input, shape index: {}]
  %s3 = inlined_call_operand.vmem [shape: s32[1,128], index: 3, kind: input, shape index: {}]
  %s4 = inlined_call_operand.vmem [shape: f32[128,1], index: 4, kind: input, shape index: {}]
  %s5 = inlined_call_operand.vmem [shape: f32[128,1], index: 5, kind: input, shape index: {}]
  %s6 = inlined_call_operand.vmem [shape: f32[128,1], index: 6, kind: output, shape index: {}]
  %s7 = sld [smem:[#allocation0]]
  $region42: #{tpu_custom_call.1} parent=0
    _
  %s9 = ssub.s32 1, %s7
  %s10 = scalar_select 0, %s9, %s7
  // Predicated region
  $region2: #{tpu_custom_call.1} parent=0 // pred_check
    _
  $region3: #{tpu_custom_call.1} parent=0 // pred_check_branch
    %12 = sbr.rel (0) target = $region5
  $region4: #{tpu_custom_call.1} parent=0 // pred_region
    _
  $region5: #{tpu_custom_call.1} parent=0 // pred_fallthru
    _
  // Predicated region
  $region6: #{tpu_custom_call.1} parent=0 // pred_check
    _
  $region7: #{tpu_custom_call.1} parent=0 // pred_check_branch
    %14 = sbr.rel (0) target = $region9
  $region8: #{tpu_custom_call.1} parent=0 // pred_region
    _
  $region9: #{tpu_custom_call.1} parent=0 // pred_fallthru
    _
  // Predicated region
  $region10: #{tpu_custom_call.1} parent=0 // pred_check
    _
  $region11: #{tpu_custom_call.1} parent=0 // pred_check_branch
    %16 = sbr.rel (0) target = $region13
  $region12: #{tpu_custom_call.1} parent=0 // pred_region
    _
  $region13: #{tpu_custom_call.1} parent=0 // pred_fallthru
    _
  // Predicated region
  $region14: #{tpu_custom_call.1} parent=0 // pred_check
    _
  $region15: #{tpu_custom_call.1} parent=0 // pred_check_branch
    %18 = sbr.rel (0) target = $region17
  $region16: #{tpu_custom_call.1} parent=0 // pred_region
    _
  $region17: #{tpu_custom_call.1} parent=0 // pred_fallthru
    _
  // Predicated region
  $region18: #{tpu_custom_call.1} parent=0 // pred_check
    _
  $region19: #{tpu_custom_call.1} parent=0 // pred_check_branch
    %20 = sbr.rel (0) target = $region21
  $region20: #{tpu_custom_call.1} parent=0 // pred_region
    _
  $region21: #{tpu_custom_call.1} parent=0 // pred_fallthru
    _
  // Predicated region
  $region22: #{tpu_custom_call.1} parent=0 // pred_check
    _
  $region23: #{tpu_custom_call.1} parent=0 // pred_check_branch
    %22 = sbr.rel (0) target = $region25
  $region24: #{tpu_custom_call.1} parent=0 // pred_region
    _
  $region25: #{tpu_custom_call.1} parent=0 // pred_fallthru
    _
  %p24 = scmp.eq.s32.totalorder 0, 0
  // Predicated region
  $region26: #{tpu_custom_call.1} parent=0 // pred_check
    %p25 = pneg %p24
  $region27: #{tpu_custom_call.1} parent=0 // pred_check_branch
    %27 = sbr.rel (%p25) target = $region29
  $region28: #{tpu_custom_call.1} parent=0 // pred_region
    %vm28 = vcmask 7168
    %29 = vst.msk [vmem:[#allocation2] sm:$0xff] %vm28, -1e+30
    %30 = vst.msk [vmem:[#allocation2 + $0x8] sm:$0xff] %vm28, -1e+30
    %31 = vst.msk [vmem:[#allocation2 + $0x10] sm:$0xff] %vm28, -1e+30
    %32 = vst.msk [vmem:[#allocation2 + $0x18] sm:$0xff] %vm28, -1e+30
    %33 = vst.msk [vmem:[#allocation2 + $0x20] sm:$0xff] %vm28, -1e+30
    %34 = vst.msk [vmem:[#allocation2 + $0x28] sm:$0xff] %vm28, -1e+30
    %35 = vst.msk [vmem:[#allocation2 + $0x30] sm:$0xff] %vm28, -1e+30
    %36 = vst.msk [vmem:[#allocation2 + $0x38] sm:$0xff] %vm28, -1e+30
    %37 = vst.msk [vmem:[#allocation2 + $0x40] sm:$0xff] %vm28, -1e+30
    %38 = vst.msk [vmem:[#allocation2 + $0x48] sm:$0xff] %vm28, -1e+30
    %39 = vst.msk [vmem:[#allocation2 + $0x50] sm:$0xff] %vm28, -1e+30
    %40 = vst.msk [vmem:[#allocation2 + $0x58] sm:$0xff] %vm28, -1e+30
    %41 = vst.msk [vmem:[#allocation2 + $0x60] sm:$0xff] %vm28, -1e+30
    %42 = vst.msk [vmem:[#allocation2 + $0x68] sm:$0xff] %vm28, -1e+30
    %43 = vst.msk [vmem:[#allocation2 + $0x70] sm:$0xff] %vm28, -1e+30
    %44 = vst.msk [vmem:[#allocation2 + $0x78] sm:$0xff] %vm28, -1e+30
    %45 = vst.msk [vmem:[#allocation3] sm:$0xff] %vm28, 0.0
    %46 = vst.msk [vmem:[#allocation3 + $0x8] sm:$0xff] %vm28, 0.0
    %47 = vst.msk [vmem:[#allocation3 + $0x10] sm:$0xff] %vm28, 0.0
    %48 = vst.msk [vmem:[#allocation3 + $0x18] sm:$0xff] %vm28, 0.0
    %49 = vst.msk [vmem:[#allocation3 + $0x20] sm:$0xff] %vm28, 0.0
    %50 = vst.msk [vmem:[#allocation3 + $0x28] sm:$0xff] %vm28, 0.0
    %51 = vst.msk [vmem:[#allocation3 + $0x30] sm:$0xff] %vm28, 0.0
    %52 = vst.msk [vmem:[#allocation3 + $0x38] sm:$0xff] %vm28, 0.0
    %53 = vst.msk [vmem:[#allocation3 + $0x40] sm:$0xff] %vm28, 0.0
    %54 = vst.msk [vmem:[#allocation3 + $0x48] sm:$0xff] %vm28, 0.0
    %55 = vst.msk [vmem:[#allocation3 + $0x50] sm:$0xff] %vm28, 0.0
    %56 = vst.msk [vmem:[#allocation3 + $0x58] sm:$0xff] %vm28, 0.0
    %57 = vst.msk [vmem:[#allocation3 + $0x60] sm:$0xff] %vm28, 0.0
    %58 = vst.msk [vmem:[#allocation3 + $0x68] sm:$0xff] %vm28, 0.0
    %59 = vst.msk [vmem:[#allocation3 + $0x70] sm:$0xff] %vm28, 0.0
    %60 = vst.msk [vmem:[#allocation3 + $0x78] sm:$0xff] %vm28, 0.0
    %61 = vst.msk [vmem:[#allocation4] sm:$0xff] %vm28, 0.0
    %62 = vst.msk [vmem:[#allocation4 + $0x8] sm:$0xff] %vm28, 0.0
    %63 = vst.msk [vmem:[#allocation4 + $0x10] sm:$0xff] %vm28, 0.0
    %64 = vst.msk [vmem:[#allocation4 + $0x18] sm:$0xff] %vm28, 0.0
    %65 = vst.msk [vmem:[#allocation4 + $0x20] sm:$0xff] %vm28, 0.0
    %66 = vst.msk [vmem:[#allocation4 + $0x28] sm:$0xff] %vm28, 0.0
    %67 = vst.msk [vmem:[#allocation4 + $0x30] sm:$0xff] %vm28, 0.0
    %68 = vst.msk [vmem:[#allocation4 + $0x38] sm:$0xff] %vm28, 0.0
    %69 = vst.msk [vmem:[#allocation4 + $0x40] sm:$0xff] %vm28, 0.0
    %70 = vst.msk [vmem:[#allocation4 + $0x48] sm:$0xff] %vm28, 0.0
    %71 = vst.msk [vmem:[#allocation4 + $0x50] sm:$0xff] %vm28, 0.0
    %72 = vst.msk [vmem:[#allocation4 + $0x58] sm:$0xff] %vm28, 0.0
    %73 = vst.msk [vmem:[#allocation4 + $0x60] sm:$0xff] %vm28, 0.0
    %74 = vst.msk [vmem:[#allocation4 + $0x68] sm:$0xff] %vm28, 0.0
    %75 = vst.msk [vmem:[#allocation4 + $0x70] sm:$0xff] %vm28, 0.0
    %76 = vst.msk [vmem:[#allocation4 + $0x78] sm:$0xff] %vm28, 0.0
  $region29: #{tpu_custom_call.1} parent=0 // pred_fallthru
    _
  %v77 = vld [vmem:[%s0] sm:$0xf]
  %v78 = vld [vmem:[%s0 + $0x4] sm:$0xf]
  %v79 = vld [vmem:[%s0 + $0x8] sm:$0xf]
  %v80 = vld [vmem:[%s0 + $0xc] sm:$0xf]
  %v81 = vld [vmem:[%s0 + $0x10] sm:$0xf]
  %v82 = vld [vmem:[%s0 + $0x14] sm:$0xf]
  %v83 = vld [vmem:[%s0 + $0x18] sm:$0xf]
  %v84 = vld [vmem:[%s0 + $0x1c] sm:$0xf]
  %v85 = vld [vmem:[%s0 + $0x20] sm:$0xf]
  %v86 = vld [vmem:[%s0 + $0x24] sm:$0xf]
  %v87 = vld [vmem:[%s0 + $0x28] sm:$0xf]
  %v88 = vld [vmem:[%s0 + $0x2c] sm:$0xf]
  %v89 = vld [vmem:[%s0 + $0x30] sm:$0xf]
  %v90 = vld [vmem:[%s0 + $0x34] sm:$0xf]
  %v91 = vld [vmem:[%s0 + $0x38] sm:$0xf]
  %v92 = vld [vmem:[%s0 + $0x3c] sm:$0xf]
  %v93 = vld [vmem:[%s1] sm:$0xf]
  %v94 = vld [vmem:[%s1 + $0x4] sm:$0xf]
  %v95 = vld [vmem:[%s1 + $0x8] sm:$0xf]
  %v96 = vld [vmem:[%s1 + $0xc] sm:$0xf]
  %v97 = vld [vmem:[%s1 + $0x10] sm:$0xf]
  %v98 = vld [vmem:[%s1 + $0x14] sm:$0xf]
  %v99 = vld [vmem:[%s1 + $0x18] sm:$0xf]
  %v100 = vld [vmem:[%s1 + $0x1c] sm:$0xf]
  %v101 = vld [vmem:[%s1 + $0x20] sm:$0xf]
  %v102 = vld [vmem:[%s1 + $0x24] sm:$0xf]
  %v103 = vld [vmem:[%s1 + $0x28] sm:$0xf]
  %v104 = vld [vmem:[%s1 + $0x2c] sm:$0xf]
  %v105 = vld [vmem:[%s1 + $0x30] sm:$0xf]
  %v106 = vld [vmem:[%s1 + $0x34] sm:$0xf]
  %v107 = vld [vmem:[%s1 + $0x38] sm:$0xf]
  %v108 = vld [vmem:[%s1 + $0x3c] sm:$0xf]
  %v125 = vunpack.c.l.b16 %v77
  %v126 = vunpack.c.l.b16 %v78
  %v127 = vunpack.c.l.b16 %v79
  %v128 = vunpack.c.l.b16 %v80
  %v129 = vunpack.c.l.b16 %v81
  %v130 = vunpack.c.l.b16 %v82
  %v131 = vunpack.c.l.b16 %v83
  %v132 = vunpack.c.l.b16 %v84
  %v133 = vunpack.c.l.b16 %v85
  %v134 = vunpack.c.l.b16 %v86
  %v135 = vunpack.c.l.b16 %v87
  %v136 = vunpack.c.l.b16 %v88
  %v137 = vunpack.c.l.b16 %v89
  %v138 = vunpack.c.l.b16 %v90
  %v139 = vunpack.c.l.b16 %v91
  %v140 = vunpack.c.l.b16 %v92
  %v141 = vpack.c.b16 %v126, %v125
  %v142 = vpack.c.b16 %v128, %v127
  %v143 = vpack.c.b16 %v130, %v129
  %v144 = vpack.c.b16 %v132, %v131
  %v145 = vpack.c.b16 %v134, %v133
  %v146 = vpack.c.b16 %v136, %v135
  %v147 = vpack.c.b16 %v138, %v137
  %v148 = vpack.c.b16 %v140, %v139
  %v173 = vunpack.c.l.b16 %v93
  %v174 = vunpack.c.l.b16 %v94
  %v175 = vunpack.c.l.b16 %v95
  %v176 = vunpack.c.l.b16 %v96
  %v177 = vunpack.c.l.b16 %v97
  %v178 = vunpack.c.l.b16 %v98
  %v179 = vunpack.c.l.b16 %v99
  %v180 = vunpack.c.l.b16 %v100
  %v181 = vunpack.c.l.b16 %v101
  %v182 = vunpack.c.l.b16 %v102
  %v183 = vunpack.c.l.b16 %v103
  %v184 = vunpack.c.l.b16 %v104
  %v185 = vunpack.c.l.b16 %v105
  %v186 = vunpack.c.l.b16 %v106
  %v187 = vunpack.c.l.b16 %v107
  %v188 = vunpack.c.l.b16 %v108
  %v189 = vpack.c.b16 %v174, %v173
  %v190 = vpack.c.b16 %v176, %v175
  %v191 = vpack.c.b16 %v178, %v177
  %v192 = vpack.c.b16 %v180, %v179
  %v193 = vpack.c.b16 %v182, %v181
  %v194 = vpack.c.b16 %v184, %v183
  %v195 = vpack.c.b16 %v186, %v185
  %v196 = vpack.c.b16 %v188, %v187
  %205 = vmatprep.subr.bf16.mxu0 0
  %206 = vmatpush1.bf16.xpose.msra.mxu0 %v196
  %207 = vmatprep.subr.bf16.mxu0 0
  %208 = vmatpush1.bf16.xpose.msra.mxu0 %v195
  %209 = vmatprep.subr.bf16.mxu0 0
  %210 = vmatpush1.bf16.xpose.msra.mxu0 %v194
  %211 = vmatprep.subr.bf16.mxu0 0
  %212 = vmatpush1.bf16.xpose.msra.mxu0 %v193
  %213 = vmatprep.subr.bf16.mxu0 0
  %214 = vmatpush1.bf16.xpose.msra.mxu0 %v192
  %215 = vmatprep.subr.bf16.mxu0 0
  %216 = vmatpush1.bf16.xpose.msra.mxu0 %v191
  %217 = vmatprep.subr.bf16.mxu0 0
  %218 = vmatpush1.bf16.xpose.msra.mxu0 %v190
  %219 = vmatprep.subr.bf16.mxu0 0
  %220 = vmatpush1.bf16.xpose.msra.mxu0 %v189
  %221 = vmatprep.subr.bf16.mxu0 0
  %222 = vmatpush2.bf16.xpose.msra.mxu0 0
  %223 = vmatprep.subr.bf16.mxu0 0
  %224 = vmatpush2.bf16.xpose.msra.mxu0 0
  %225 = vmatprep.subr.bf16.mxu0 0
  %226 = vmatpush2.bf16.xpose.msra.mxu0 0
  %227 = vmatprep.subr.bf16.mxu0 0
  %228 = vmatpush2.bf16.xpose.msra.mxu0 0
  %229 = vmatprep.subr.bf16.mxu0 0
  %230 = vmatpush2.bf16.xpose.msra.mxu0 0
  %231 = vmatprep.subr.bf16.mxu0 0
  %232 = vmatpush2.bf16.xpose.msra.mxu0 0
  %233 = vmatprep.subr.bf16.mxu0 0
  %234 = vmatpush2.bf16.xpose.msra.mxu0 0
  %235 = vmatprep.subr.bf16.mxu0 0
  %236 = vmatpush2.bf16.xpose.msra.mxu0 0
  %237 = vmatprep.mubr.bf16.mxu0 0
  %238 = vmatmul.mubr.bf16.gmra.mxu0 %v141
  %v239 = vpop.f32.mrf.mxu0
  %v240 = vadd.f32 0.0, %v239
  %v241 = vpop.f32.mrf.mxu0
  %v242 = vpop.f32.mrf.mxu0
  %v243 = vadd.f32 0.0, %v242
  %v244 = vpop.f32.mrf.mxu0
  %245 = vmatprep.mubr.bf16.mxu0 0
  %246 = vmatmul.mubr.bf16.gmra.mxu0 %v142
  %v247 = vpop.f32.mrf.mxu0
  %v248 = vadd.f32 0.0, %v247
  %v249 = vpop.f32.mrf.mxu0
  %v250 = vpop.f32.mrf.mxu0
  %v251 = vadd.f32 0.0, %v250
  %v252 = vpop.f32.mrf.mxu0
  %253 = vmatprep.mubr.bf16.mxu0 0
  %254 = vmatmul.mubr.bf16.gmra.mxu0 %v143
  %v255 = vpop.f32.mrf.mxu0
  %v256 = vadd.f32 0.0, %v255
  %v257 = vpop.f32.mrf.mxu0
  %v258 = vpop.f32.mrf.mxu0
  %v259 = vadd.f32 0.0, %v258
  %v260 = vpop.f32.mrf.mxu0
  %261 = vmatprep.mubr.bf16.mxu0 0
  %262 = vmatmul.mubr.bf16.gmra.mxu0 %v144
  %v263 = vpop.f32.mrf.mxu0
  %v264 = vadd.f32 0.0, %v263
  %v265 = vpop.f32.mrf.mxu0
  %v266 = vpop.f32.mrf.mxu0
  %v267 = vadd.f32 0.0, %v266
  %v268 = vpop.f32.mrf.mxu0
  %269 = vmatprep.mubr.bf16.mxu0 0
  %270 = vmatmul.mubr.bf16.gmra.mxu0 %v145
  %v271 = vpop.f32.mrf.mxu0
  %v272 = vadd.f32 0.0, %v271
  %v273 = vpop.f32.mrf.mxu0
  %v274 = vpop.f32.mrf.mxu0
  %v275 = vadd.f32 0.0, %v274
  %v276 = vpop.f32.mrf.mxu0
  %277 = vmatprep.mubr.bf16.mxu0 0
  %278 = vmatmul.mubr.bf16.gmra.mxu0 %v146
  %v279 = vpop.f32.mrf.mxu0
  %v280 = vadd.f32 0.0, %v279
  %v281 = vpop.f32.mrf.mxu0
  %v282 = vpop.f32.mrf.mxu0
  %v283 = vadd.f32 0.0, %v282
  %v284 = vpop.f32.mrf.mxu0
  %285 = vmatprep.mubr.bf16.mxu0 0
  %286 = vmatmul.mubr.bf16.gmra.mxu0 %v147
  %v287 = vpop.f32.mrf.mxu0
  %v288 = vadd.f32 0.0, %v287
  %v289 = vpop.f32.mrf.mxu0
  %v290 = vpop.f32.mrf.mxu0
  %v291 = vadd.f32 0.0, %v290
  %v292 = vpop.f32.mrf.mxu0
  %293 = vmatprep.mubr.bf16.mxu0 0
  %294 = vmatmul.mubr.bf16.gmra.mxu0 %v148
  %v295 = vpop.f32.mrf.mxu0
  %v296 = vadd.f32 0.0, %v295
  %v297 = vpop.f32.mrf.mxu0
  %v298 = vpop.f32.mrf.mxu0
  %v299 = vadd.f32 0.0, %v298
  %v300 = vpop.f32.mrf.mxu0
  %301 = vdwg.mxu0
  %s302 = smul.u32 0, 128
  %v303 = vlaneseq
  %v304 = vshrl.u32 %v303, 7
  %v305 = vadd.s32 %v304, 8
  %v306 = vadd.s32 %v304, 16
  %v307 = vadd.s32 %v304, 24
  %v308 = vadd.s32 %v304, 32
  %v309 = vadd.s32 %v304, 40
  %v310 = vadd.s32 %v304, 48
  %v311 = vadd.s32 %v304, 56
  %v312 = vadd.s32 %v304, 64
  %v313 = vadd.s32 %v304, 72
  %v314 = vadd.s32 %v304, 80
  %v315 = vadd.s32 %v304, 88
  %v316 = vadd.s32 %v304, 96
  %v317 = vadd.s32 %v304, 104
  %v318 = vadd.s32 %v304, 112
  %v319 = vadd.s32 %v304, 120
  %v320 = vstv %s302
  %v321 = vadd.s32 %v320, %v304
  %v322 = vadd.s32 %v320, %v305
  %v323 = vadd.s32 %v320, %v306
  %v324 = vadd.s32 %v320, %v307
  %v325 = vadd.s32 %v320, %v308
  %v326 = vadd.s32 %v320, %v309
  %v327 = vadd.s32 %v320, %v310
  %v328 = vadd.s32 %v320, %v311
  %v329 = vadd.s32 %v320, %v312
  %v330 = vadd.s32 %v320, %v313
  %v331 = vadd.s32 %v320, %v314
  %v332 = vadd.s32 %v320, %v315
  %v333 = vadd.s32 %v320, %v316
  %v334 = vadd.s32 %v320, %v317
  %v335 = vadd.s32 %v320, %v318
  %v336 = vadd.s32 %v320, %v319
  %s337 = smul.u32 0, 128
  %v338 = vlaneseq
  %v339 = vand.u32 %v338, 127
  %v340 = vstv %s337
  %v341 = vadd.s32 %v340, %v339
  %vm342 = vcmp.ne.s32.totalorder %v321, %v341
  %vm343 = vcmp.ne.s32.totalorder %v322, %v341
  %vm344 = vcmp.ne.s32.totalorder %v323, %v341
  %vm345 = vcmp.ne.s32.totalorder %v324, %v341
  %vm346 = vcmp.ne.s32.totalorder %v325, %v341
  %vm347 = vcmp.ne.s32.totalorder %v326, %v341
  %vm348 = vcmp.ne.s32.totalorder %v327, %v341
  %vm349 = vcmp.ne.s32.totalorder %v328, %v341
  %vm350 = vcmp.ne.s32.totalorder %v329, %v341
  %vm351 = vcmp.ne.s32.totalorder %v330, %v341
  %vm352 = vcmp.ne.s32.totalorder %v331, %v341
  %vm353 = vcmp.ne.s32.totalorder %v332, %v341
  %vm354 = vcmp.ne.s32.totalorder %v333, %v341
  %vm355 = vcmp.ne.s32.totalorder %v334, %v341
  %vm356 = vcmp.ne.s32.totalorder %v335, %v341
  %vm357 = vcmp.ne.s32.totalorder %v336, %v341
  %vm358 = vcmp.lt.s32.totalorder %v341, 16
  %v359 = vsel %vm358, 1, 0
  %vm360 = vcmp.eq.s32.totalorder %v359, 1
  %vm361 = vmand %vm342, %vm360
  %vm362 = vmand %vm343, %vm360
  %vm363 = vmand %vm344, %vm360
  %vm364 = vmand %vm345, %vm360
  %vm365 = vmand %vm346, %vm360
  %vm366 = vmand %vm347, %vm360
  %vm367 = vmand %vm348, %vm360
  %vm368 = vmand %vm349, %vm360
  %vm369 = vmand %vm350, %vm360
  %vm370 = vmand %vm351, %vm360
  %vm371 = vmand %vm352, %vm360
  %vm372 = vmand %vm353, %vm360
  %vm373 = vmand %vm354, %vm360
  %vm374 = vmand %vm355, %vm360
  %vm375 = vmand %vm356, %vm360
  %vm376 = vmand %vm357, %vm360
  %v377 = vsel %vm361, %v240, -1e+30
  %v378 = vsel %vm362, %v243, -1e+30
  %v379 = vsel %vm363, %v248, -1e+30
  %v380 = vsel %vm364, %v251, -1e+30
  %v381 = vsel %vm365, %v256, -1e+30
  %v382 = vsel %vm366, %v259, -1e+30
  %v383 = vsel %vm367, %v264, -1e+30
  %v384 = vsel %vm368, %v267, -1e+30
  %v385 = vsel %vm369, %v272, -1e+30
  %v386 = vsel %vm370, %v275, -1e+30
  %v387 = vsel %vm371, %v280, -1e+30
  %v388 = vsel %vm372, %v283, -1e+30
  %v389 = vsel %vm373, %v288, -1e+30
  %v390 = vsel %vm374, %v291, -1e+30
  %v391 = vsel %vm375, %v296, -1e+30
  %v392 = vsel %vm376, %v299, -1e+30
  %v393 = vld [vmem:[#allocation2] sm:$0xff]
  %v394 = vld [vmem:[#allocation2 + $0x8] sm:$0xff]
  %v395 = vld [vmem:[#allocation2 + $0x10] sm:$0xff]
  %v396 = vld [vmem:[#allocation2 + $0x18] sm:$0xff]
  %v397 = vld [vmem:[#allocation2 + $0x20] sm:$0xff]
  %v398 = vld [vmem:[#allocation2 + $0x28] sm:$0xff]
  %v399 = vld [vmem:[#allocation2 + $0x30] sm:$0xff]
  %v400 = vld [vmem:[#allocation2 + $0x38] sm:$0xff]
  %v401 = vld [vmem:[#allocation2 + $0x40] sm:$0xff]
  %v402 = vld [vmem:[#allocation2 + $0x48] sm:$0xff]
  %v403 = vld [vmem:[#allocation2 + $0x50] sm:$0xff]
  %v404 = vld [vmem:[#allocation2 + $0x58] sm:$0xff]
  %v405 = vld [vmem:[#allocation2 + $0x60] sm:$0xff]
  %v406 = vld [vmem:[#allocation2 + $0x68] sm:$0xff]
  %v407 = vld [vmem:[#allocation2 + $0x70] sm:$0xff]
  %v408 = vld [vmem:[#allocation2 + $0x78] sm:$0xff]
  %409 = vmax.xlane.f32.xlu0 %v377
  %v410 = vpop.xlane.xlu0 %409
  %411 = vmax.xlane.f32.xlu0 %v378
  %v412 = vpop.xlane.xlu0 %411
  %413 = vmax.xlane.f32.xlu0 %v379
  %v414 = vpop.xlane.xlu0 %413
  %415 = vmax.xlane.f32.xlu0 %v380
  %v416 = vpop.xlane.xlu0 %415
  %417 = vmax.xlane.f32.xlu0 %v381
  %v418 = vpop.xlane.xlu0 %417
  %419 = vmax.xlane.f32.xlu0 %v382
  %v420 = vpop.xlane.xlu0 %419
  %421 = vmax.xlane.f32.xlu0 %v383
  %v422 = vpop.xlane.xlu0 %421
  %423 = vmax.xlane.f32.xlu0 %v384
  %v424 = vpop.xlane.xlu0 %423
  %425 = vmax.xlane.f32.xlu0 %v385
  %v426 = vpop.xlane.xlu0 %425
  %427 = vmax.xlane.f32.xlu0 %v386
  %v428 = vpop.xlane.xlu0 %427
  %429 = vmax.xlane.f32.xlu0 %v387
  %v430 = vpop.xlane.xlu0 %429
  %431 = vmax.xlane.f32.xlu0 %v388
  %v432 = vpop.xlane.xlu0 %431
  %433 = vmax.xlane.f32.xlu0 %v389
  %v434 = vpop.xlane.xlu0 %433
  %435 = vmax.xlane.f32.xlu0 %v390
  %v436 = vpop.xlane.xlu0 %435
  %437 = vmax.xlane.f32.xlu0 %v391
  %v438 = vpop.xlane.xlu0 %437
  %439 = vmax.xlane.f32.xlu0 %v392
  %v440 = vpop.xlane.xlu0 %439
  %v441 = vmax.f32 %v393, %v410
  %v442 = vmax.f32 %v394, %v412
  %v443 = vmax.f32 %v395, %v414
  %v444 = vmax.f32 %v396, %v416
  %v445 = vmax.f32 %v397, %v418
  %v446 = vmax.f32 %v398, %v420
  %v447 = vmax.f32 %v399, %v422
  %v448 = vmax.f32 %v400, %v424
  %v449 = vmax.f32 %v401, %v426
  %v450 = vmax.f32 %v402, %v428
  %v451 = vmax.f32 %v403, %v430
  %v452 = vmax.f32 %v404, %v432
  %v453 = vmax.f32 %v405, %v434
  %v454 = vmax.f32 %v406, %v436
  %v455 = vmax.f32 %v407, %v438
  %v456 = vmax.f32 %v408, %v440
  %v457 = vld [vmem:[#allocation3] sm:$0xff]
  %v458 = vld [vmem:[#allocation3 + $0x8] sm:$0xff]
  %v459 = vld [vmem:[#allocation3 + $0x10] sm:$0xff]
  %v460 = vld [vmem:[#allocation3 + $0x18] sm:$0xff]
  %v461 = vld [vmem:[#allocation3 + $0x20] sm:$0xff]
  %v462 = vld [vmem:[#allocation3 + $0x28] sm:$0xff]
  %v463 = vld [vmem:[#allocation3 + $0x30] sm:$0xff]
  %v464 = vld [vmem:[#allocation3 + $0x38] sm:$0xff]
  %v465 = vld [vmem:[#allocation3 + $0x40] sm:$0xff]
  %v466 = vld [vmem:[#allocation3 + $0x48] sm:$0xff]
  %v467 = vld [vmem:[#allocation3 + $0x50] sm:$0xff]
  %v468 = vld [vmem:[#allocation3 + $0x58] sm:$0xff]
  %v469 = vld [vmem:[#allocation3 + $0x60] sm:$0xff]
  %v470 = vld [vmem:[#allocation3 + $0x68] sm:$0xff]
  %v471 = vld [vmem:[#allocation3 + $0x70] sm:$0xff]
  %v472 = vld [vmem:[#allocation3 + $0x78] sm:$0xff]
  %v473 = vsub.f32 %v393, %v441
  %v474 = vsub.f32 %v394, %v442
  %v475 = vsub.f32 %v395, %v443
  %v476 = vsub.f32 %v396, %v444
  %v477 = vsub.f32 %v397, %v445
  %v478 = vsub.f32 %v398, %v446
  %v479 = vsub.f32 %v399, %v447
  %v480 = vsub.f32 %v400, %v448
  %v481 = vsub.f32 %v401, %v449
  %v482 = vsub.f32 %v402, %v450
  %v483 = vsub.f32 %v403, %v451
  %v484 = vsub.f32 %v404, %v452
  %v485 = vsub.f32 %v405, %v453
  %v486 = vsub.f32 %v406, %v454
  %v487 = vsub.f32 %v407, %v455
  %v488 = vsub.f32 %v408, %v456
  %v489 = vmul.f32 %v473, 1.442695
  %v490 = vpow.pop %v489
  %v491 = vmul.f32 %v474, 1.442695
  %v492 = vpow.pop %v491
  %v493 = vmul.f32 %v475, 1.442695
  %v494 = vpow.pop %v493
  %v495 = vmul.f32 %v476, 1.442695
  %v496 = vpow.pop %v495
  %v497 = vmul.f32 %v477, 1.442695
  %v498 = vpow.pop %v497
  %v499 = vmul.f32 %v478, 1.442695
  %v500 = vpow.pop %v499
  %v501 = vmul.f32 %v479, 1.442695
  %v502 = vpow.pop %v501
  %v503 = vmul.f32 %v480, 1.442695
  %v504 = vpow.pop %v503
  %v505 = vmul.f32 %v481, 1.442695
  %v506 = vpow.pop %v505
  %v507 = vmul.f32 %v482, 1.442695
  %v508 = vpow.pop %v507
  %v509 = vmul.f32 %v483, 1.442695
  %v510 = vpow.pop %v509
  %v511 = vmul.f32 %v484, 1.442695
  %v512 = vpow.pop %v511
  %v513 = vmul.f32 %v485, 1.442695
  %v514 = vpow.pop %v513
  %v515 = vmul.f32 %v486, 1.442695
  %v516 = vpow.pop %v515
  %v517 = vmul.f32 %v487, 1.442695
  %v518 = vpow.pop %v517
  %v519 = vmul.f32 %v488, 1.442695
  %v520 = vpow.pop %v519
  %v521 = vmul.f32 %v457, %v490
  %v522 = vmul.f32 %v458, %v492
  %v523 = vmul.f32 %v459, %v494
  %v524 = vmul.f32 %v460, %v496
  %v525 = vmul.f32 %v461, %v498
  %v526 = vmul.f32 %v462, %v500
  %v527 = vmul.f32 %v463, %v502
  %v528 = vmul.f32 %v464, %v504
  %v529 = vmul.f32 %v465, %v506
  %v530 = vmul.f32 %v466, %v508
  %v531 = vmul.f32 %v467, %v510
  %v532 = vmul.f32 %v468, %v512
  %v533 = vmul.f32 %v469, %v514
  %v534 = vmul.f32 %v470, %v516
  %v535 = vmul.f32 %v471, %v518
  %v536 = vmul.f32 %v472, %v520
  %538 = vset.pattern.permute.xlu0 0
  %539 = vperm.xlu0 %538, %v441
  %v540 = vpop.permute.xlu0 %539
  %543 = vset.pattern.permute.xlu0 0
  %544 = vperm.xlu0 %543, %v442
  %v545 = vpop.permute.xlu0 %544
  %548 = vset.pattern.permute.xlu0 0
  %549 = vperm.xlu0 %548, %v443
  %v550 = vpop.permute.xlu0 %549
  %553 = vset.pattern.permute.xlu0 0
  %554 = vperm.xlu0 %553, %v444
  %v555 = vpop.permute.xlu0 %554
  %558 = vset.pattern.permute.xlu0 0
  %559 = vperm.xlu0 %558, %v445
  %v560 = vpop.permute.xlu0 %559
  %563 = vset.pattern.permute.xlu0 0
  %564 = vperm.xlu0 %563, %v446
  %v565 = vpop.permute.xlu0 %564
  %568 = vset.pattern.permute.xlu0 0
  %569 = vperm.xlu0 %568, %v447
  %v570 = vpop.permute.xlu0 %569
  %573 = vset.pattern.permute.xlu0 0
  %574 = vperm.xlu0 %573, %v448
  %v575 = vpop.permute.xlu0 %574
  %578 = vset.pattern.permute.xlu0 0
  %579 = vperm.xlu0 %578, %v449
  %v580 = vpop.permute.xlu0 %579
  %583 = vset.pattern.permute.xlu0 0
  %584 = vperm.xlu0 %583, %v450
  %v585 = vpop.permute.xlu0 %584
  %588 = vset.pattern.permute.xlu0 0
  %589 = vperm.xlu0 %588, %v451
  %v590 = vpop.permute.xlu0 %589
  %593 = vset.pattern.permute.xlu0 0
  %594 = vperm.xlu0 %593, %v452
  %v595 = vpop.permute.xlu0 %594
  %598 = vset.pattern.permute.xlu0 0
  %599 = vperm.xlu0 %598, %v453
  %v600 = vpop.permute.xlu0 %599
  %603 = vset.pattern.permute.xlu0 0
  %604 = vperm.xlu0 %603, %v454
  %v605 = vpop.permute.xlu0 %604
  %608 = vset.pattern.permute.xlu0 0
  %609 = vperm.xlu0 %608, %v455
  %v610 = vpop.permute.xlu0 %609
  %613 = vset.pattern.permute.xlu0 0
  %614 = vperm.xlu0 %613, %v456
  %v615 = vpop.permute.xlu0 %614
  %v617 = vsub.f32 %v377, %v540
  %v618 = vsub.f32 %v378, %v545
  %v619 = vsub.f32 %v379, %v550
  %v620 = vsub.f32 %v380, %v555
  %v621 = vsub.f32 %v381, %v560
  %v622 = vsub.f32 %v382, %v565
  %v623 = vsub.f32 %v383, %v570
  %v624 = vsub.f32 %v384, %v575
  %v625 = vsub.f32 %v385, %v580
  %v626 = vsub.f32 %v386, %v585
  %v627 = vsub.f32 %v387, %v590
  %v628 = vsub.f32 %v388, %v595
  %v629 = vsub.f32 %v389, %v600
  %v630 = vsub.f32 %v390, %v605
  %v631 = vsub.f32 %v391, %v610
  %v632 = vsub.f32 %v392, %v615
  %v633 = vmul.f32 %v617, 1.442695
  %v634 = vpow.pop %v633
  %v635 = vmul.f32 %v618, 1.442695
  %v636 = vpow.pop %v635
  %v637 = vmul.f32 %v619, 1.442695
  %v638 = vpow.pop %v637
  %v639 = vmul.f32 %v620, 1.442695
  %v640 = vpow.pop %v639
  %v641 = vmul.f32 %v621, 1.442695
  %v642 = vpow.pop %v641
  %v643 = vmul.f32 %v622, 1.442695
  %v644 = vpow.pop %v643
  %v645 = vmul.f32 %v623, 1.442695
  %v646 = vpow.pop %v645
  %v647 = vmul.f32 %v624, 1.442695
  %v648 = vpow.pop %v647
  %v649 = vmul.f32 %v625, 1.442695
  %v650 = vpow.pop %v649
  %v651 = vmul.f32 %v626, 1.442695
  %v652 = vpow.pop %v651
  %v653 = vmul.f32 %v627, 1.442695
  %v654 = vpow.pop %v653
  %v655 = vmul.f32 %v628, 1.442695
  %v656 = vpow.pop %v655
  %v657 = vmul.f32 %v629, 1.442695
  %v658 = vpow.pop %v657
  %v659 = vmul.f32 %v630, 1.442695
  %v660 = vpow.pop %v659
  %v661 = vmul.f32 %v631, 1.442695
  %v662 = vpow.pop %v661
  %v663 = vmul.f32 %v632, 1.442695
  %v664 = vpow.pop %v663
  %665 = vadd.xlane.f32.xlu0 %v634
  %v666 = vpop.xlane.xlu0 %665
  %667 = vadd.xlane.f32.xlu0 %v636
  %v668 = vpop.xlane.xlu0 %667
  %669 = vadd.xlane.f32.xlu0 %v638
  %v670 = vpop.xlane.xlu0 %669
  %671 = vadd.xlane.f32.xlu0 %v640
  %v672 = vpop.xlane.xlu0 %671
  %673 = vadd.xlane.f32.xlu0 %v642
  %v674 = vpop.xlane.xlu0 %673
  %675 = vadd.xlane.f32.xlu0 %v644
  %v676 = vpop.xlane.xlu0 %675
  %677 = vadd.xlane.f32.xlu0 %v646
  %v678 = vpop.xlane.xlu0 %677
  %679 = vadd.xlane.f32.xlu0 %v648
  %v680 = vpop.xlane.xlu0 %679
  %681 = vadd.xlane.f32.xlu0 %v650
  %v682 = vpop.xlane.xlu0 %681
  %683 = vadd.xlane.f32.xlu0 %v652
  %v684 = vpop.xlane.xlu0 %683
  %685 = vadd.xlane.f32.xlu0 %v654
  %v686 = vpop.xlane.xlu0 %685
  %687 = vadd.xlane.f32.xlu0 %v656
  %v688 = vpop.xlane.xlu0 %687
  %689 = vadd.xlane.f32.xlu0 %v658
  %v690 = vpop.xlane.xlu0 %689
  %691 = vadd.xlane.f32.xlu0 %v660
  %v692 = vpop.xlane.xlu0 %691
  %693 = vadd.xlane.f32.xlu0 %v662
  %v694 = vpop.xlane.xlu0 %693
  %695 = vadd.xlane.f32.xlu0 %v664
  %v696 = vpop.xlane.xlu0 %695
  %v697 = vadd.f32 %v521, %v666
  %v698 = vadd.f32 %v522, %v668
  %v699 = vadd.f32 %v523, %v670
  %v700 = vadd.f32 %v524, %v672
  %v701 = vadd.f32 %v525, %v674
  %v702 = vadd.f32 %v526, %v676
  %v703 = vadd.f32 %v527, %v678
  %v704 = vadd.f32 %v528, %v680
  %v705 = vadd.f32 %v529, %v682
  %v706 = vadd.f32 %v530, %v684
  %v707 = vadd.f32 %v531, %v686
  %v708 = vadd.f32 %v532, %v688
  %v709 = vadd.f32 %v533, %v690
  %v710 = vadd.f32 %v534, %v692
  %v711 = vadd.f32 %v535, %v694
  %v712 = vadd.f32 %v536, %v696
  %vm713 = vcmask 7168
  %714 = vst.msk [vmem:[#allocation3] sm:$0xff] %vm713, %v697
  %715 = vst.msk [vmem:[#allocation3 + $0x8] sm:$0xff] %vm713, %v698
  %716 = vst.msk [vmem:[#allocation3 + $0x10] sm:$0xff] %vm713, %v699
  %717 = vst.msk [vmem:[#allocation3 + $0x18] sm:$0xff] %vm713, %v700
  %718 = vst.msk [vmem:[#allocation3 + $0x20] sm:$0xff] %vm713, %v701
  %719 = vst.msk [vmem:[#allocation3 + $0x28] sm:$0xff] %vm713, %v702
  %720 = vst.msk [vmem:[#allocation3 + $0x30] sm:$0xff] %vm713, %v703
  %721 = vst.msk [vmem:[#allocation3 + $0x38] sm:$0xff] %vm713, %v704
  %722 = vst.msk [vmem:[#allocation3 + $0x40] sm:$0xff] %vm713, %v705
  %723 = vst.msk [vmem:[#allocation3 + $0x48] sm:$0xff] %vm713, %v706
  %724 = vst.msk [vmem:[#allocation3 + $0x50] sm:$0xff] %vm713, %v707
  %725 = vst.msk [vmem:[#allocation3 + $0x58] sm:$0xff] %vm713, %v708
  %726 = vst.msk [vmem:[#allocation3 + $0x60] sm:$0xff] %vm713, %v709
  %727 = vst.msk [vmem:[#allocation3 + $0x68] sm:$0xff] %vm713, %v710
  %728 = vst.msk [vmem:[#allocation3 + $0x70] sm:$0xff] %vm713, %v711
  %729 = vst.msk [vmem:[#allocation3 + $0x78] sm:$0xff] %vm713, %v712
  %730 = vst.msk [vmem:[#allocation2] sm:$0xff] %vm713, %v441
  %731 = vst.msk [vmem:[#allocation2 + $0x8] sm:$0xff] %vm713, %v442
  %732 = vst.msk [vmem:[#allocation2 + $0x10] sm:$0xff] %vm713, %v443
  %733 = vst.msk [vmem:[#allocation2 + $0x18] sm:$0xff] %vm713, %v444
  %734 = vst.msk [vmem:[#allocation2 + $0x20] sm:$0xff] %vm713, %v445
  %735 = vst.msk [vmem:[#allocation2 + $0x28] sm:$0xff] %vm713, %v446
  %736 = vst.msk [vmem:[#allocation2 + $0x30] sm:$0xff] %vm713, %v447
  %737 = vst.msk [vmem:[#allocation2 + $0x38] sm:$0xff] %vm713, %v448
  %738 = vst.msk [vmem:[#allocation2 + $0x40] sm:$0xff] %vm713, %v449
  %739 = vst.msk [vmem:[#allocation2 + $0x48] sm:$0xff] %vm713, %v450
  %740 = vst.msk [vmem:[#allocation2 + $0x50] sm:$0xff] %vm713, %v451
  %741 = vst.msk [vmem:[#allocation2 + $0x58] sm:$0xff] %vm713, %v452
  %742 = vst.msk [vmem:[#allocation2 + $0x60] sm:$0xff] %vm713, %v453
  %743 = vst.msk [vmem:[#allocation2 + $0x68] sm:$0xff] %vm713, %v454
  %744 = vst.msk [vmem:[#allocation2 + $0x70] sm:$0xff] %vm713, %v455
  %745 = vst.msk [vmem:[#allocation2 + $0x78] sm:$0xff] %vm713, %v456
  %v746 = vld [vmem:[#allocation4] sm:$0xff]
  %v747 = vld [vmem:[#allocation4 + $0x8] sm:$0xff]
  %v748 = vld [vmem:[#allocation4 + $0x10] sm:$0xff]
  %v749 = vld [vmem:[#allocation4 + $0x18] sm:$0xff]
  %v750 = vld [vmem:[#allocation4 + $0x20] sm:$0xff]
  %v751 = vld [vmem:[#allocation4 + $0x28] sm:$0xff]
  %v752 = vld [vmem:[#allocation4 + $0x30] sm:$0xff]
  %v753 = vld [vmem:[#allocation4 + $0x38] sm:$0xff]
  %v754 = vld [vmem:[#allocation4 + $0x40] sm:$0xff]
  %v755 = vld [vmem:[#allocation4 + $0x48] sm:$0xff]
  %v756 = vld [vmem:[#allocation4 + $0x50] sm:$0xff]
  %v757 = vld [vmem:[#allocation4 + $0x58] sm:$0xff]
  %v758 = vld [vmem:[#allocation4 + $0x60] sm:$0xff]
  %v759 = vld [vmem:[#allocation4 + $0x68] sm:$0xff]
  %v760 = vld [vmem:[#allocation4 + $0x70] sm:$0xff]
  %v761 = vld [vmem:[#allocation4 + $0x78] sm:$0xff]
  %v762 = vld [vmem:[%s2] sm:$0xff]
  %v763 = vld [vmem:[%s2 + $0x8] sm:$0xff]
  %v764 = vld [vmem:[%s2 + $0x10] sm:$0xff]
  %v765 = vld [vmem:[%s2 + $0x18] sm:$0xff]
  %v766 = vld [vmem:[%s2 + $0x20] sm:$0xff]
  %v767 = vld [vmem:[%s2 + $0x28] sm:$0xff]
  %v768 = vld [vmem:[%s2 + $0x30] sm:$0xff]
  %v769 = vld [vmem:[%s2 + $0x38] sm:$0xff]
  %v770 = vld [vmem:[%s2 + $0x40] sm:$0xff]
  %v771 = vld [vmem:[%s2 + $0x48] sm:$0xff]
  %v772 = vld [vmem:[%s2 + $0x50] sm:$0xff]
  %v773 = vld [vmem:[%s2 + $0x58] sm:$0xff]
  %v774 = vld [vmem:[%s2 + $0x60] sm:$0xff]
  %v775 = vld [vmem:[%s2 + $0x68] sm:$0xff]
  %v776 = vld [vmem:[%s2 + $0x70] sm:$0xff]
  %v777 = vld [vmem:[%s2 + $0x78] sm:$0xff]
  %v778 = vld [vmem:[%s3] sm:$0x1]
  %779 = vset.pattern.permute.xlu0 0
  %780 = vperm.xlu0 %779, %v762
  %v781 = vpop.permute.xlu0 %780
  %782 = vset.pattern.permute.xlu0 0
  %783 = vperm.xlu0 %782, %v763
  %v784 = vpop.permute.xlu0 %783
  %785 = vset.pattern.permute.xlu0 0
  %786 = vperm.xlu0 %785, %v764
  %v787 = vpop.permute.xlu0 %786
  %788 = vset.pattern.permute.xlu0 0
  %789 = vperm.xlu0 %788, %v765
  %v790 = vpop.permute.xlu0 %789
  %791 = vset.pattern.permute.xlu0 0
  %792 = vperm.xlu0 %791, %v766
  %v793 = vpop.permute.xlu0 %792
  %794 = vset.pattern.permute.xlu0 0
  %795 = vperm.xlu0 %794, %v767
  %v796 = vpop.permute.xlu0 %795
  %797 = vset.pattern.permute.xlu0 0
  %798 = vperm.xlu0 %797, %v768
  %v799 = vpop.permute.xlu0 %798
  %800 = vset.pattern.permute.xlu0 0
  %801 = vperm.xlu0 %800, %v769
  %v802 = vpop.permute.xlu0 %801
  %803 = vset.pattern.permute.xlu0 0
  %804 = vperm.xlu0 %803, %v770
  %v805 = vpop.permute.xlu0 %804
  %806 = vset.pattern.permute.xlu0 0
  %807 = vperm.xlu0 %806, %v771
  %v808 = vpop.permute.xlu0 %807
  %809 = vset.pattern.permute.xlu0 0
  %810 = vperm.xlu0 %809, %v772
  %v811 = vpop.permute.xlu0 %810
  %812 = vset.pattern.permute.xlu0 0
  %813 = vperm.xlu0 %812, %v773
  %v814 = vpop.permute.xlu0 %813
  %815 = vset.pattern.permute.xlu0 0
  %816 = vperm.xlu0 %815, %v774
  %v817 = vpop.permute.xlu0 %816
  %818 = vset.pattern.permute.xlu0 0
  %819 = vperm.xlu0 %818, %v775
  %v820 = vpop.permute.xlu0 %819
  %821 = vset.pattern.permute.xlu0 0
  %822 = vperm.xlu0 %821, %v776
  %v823 = vpop.permute.xlu0 %822
  %824 = vset.pattern.permute.xlu0 0
  %825 = vperm.xlu0 %824, %v777
  %v826 = vpop.permute.xlu0 %825
  %v827 = vlaneseq
  %v828 = vshrl.u32 %v827, 7
  %v829 = vsub.s32 0, %v828
  %v830 = vrot.slane %v778, %v829
  %vm831 = vcmp.eq.s32.totalorder %v781, %v830
  %vm832 = vcmp.eq.s32.totalorder %v784, %v830
  %vm833 = vcmp.eq.s32.totalorder %v787, %v830
  %vm834 = vcmp.eq.s32.totalorder %v790, %v830
  %vm835 = vcmp.eq.s32.totalorder %v793, %v830
  %vm836 = vcmp.eq.s32.totalorder %v796, %v830
  %vm837 = vcmp.eq.s32.totalorder %v799, %v830
  %vm838 = vcmp.eq.s32.totalorder %v802, %v830
  %vm839 = vcmp.eq.s32.totalorder %v805, %v830
  %vm840 = vcmp.eq.s32.totalorder %v808, %v830
  %vm841 = vcmp.eq.s32.totalorder %v811, %v830
  %vm842 = vcmp.eq.s32.totalorder %v814, %v830
  %vm843 = vcmp.eq.s32.totalorder %v817, %v830
  %vm844 = vcmp.eq.s32.totalorder %v820, %v830
  %vm845 = vcmp.eq.s32.totalorder %v823, %v830
  %vm846 = vcmp.eq.s32.totalorder %v826, %v830
  %v847 = vsel %vm831, %v240, 0.0
  %v848 = vsel %vm832, %v243, 0.0
  %v849 = vsel %vm833, %v248, 0.0
  %v850 = vsel %vm834, %v251, 0.0
  %v851 = vsel %vm835, %v256, 0.0
  %v852 = vsel %vm836, %v259, 0.0
  %v853 = vsel %vm837, %v264, 0.0
  %v854 = vsel %vm838, %v267, 0.0
  %v855 = vsel %vm839, %v272, 0.0
  %v856 = vsel %vm840, %v275, 0.0
  %v857 = vsel %vm841, %v280, 0.0
  %v858 = vsel %vm842, %v283, 0.0
  %v859 = vsel %vm843, %v288, 0.0
  %v860 = vsel %vm844, %v291, 0.0
  %v861 = vsel %vm845, %v296, 0.0
  %v862 = vsel %vm846, %v299, 0.0
  %863 = vadd.xlane.f32.xlu0 %v847
  %v864 = vpop.xlane.xlu0 %863
  %865 = vadd.xlane.f32.xlu0 %v848
  %v866 = vpop.xlane.xlu0 %865
  %867 = vadd.xlane.f32.xlu0 %v849
  %v868 = vpop.xlane.xlu0 %867
  %869 = vadd.xlane.f32.xlu0 %v850
  %v870 = vpop.xlane.xlu0 %869
  %871 = vadd.xlane.f32.xlu0 %v851
  %v872 = vpop.xlane.xlu0 %871
  %873 = vadd.xlane.f32.xlu0 %v852
  %v874 = vpop.xlane.xlu0 %873
  %875 = vadd.xlane.f32.xlu0 %v853
  %v876 = vpop.xlane.xlu0 %875
  %877 = vadd.xlane.f32.xlu0 %v854
  %v878 = vpop.xlane.xlu0 %877
  %879 = vadd.xlane.f32.xlu0 %v855
  %v880 = vpop.xlane.xlu0 %879
  %881 = vadd.xlane.f32.xlu0 %v856
  %v882 = vpop.xlane.xlu0 %881
  %883 = vadd.xlane.f32.xlu0 %v857
  %v884 = vpop.xlane.xlu0 %883
  %885 = vadd.xlane.f32.xlu0 %v858
  %v886 = vpop.xlane.xlu0 %885
  %887 = vadd.xlane.f32.xlu0 %v859
  %v888 = vpop.xlane.xlu0 %887
  %889 = vadd.xlane.f32.xlu0 %v860
  %v890 = vpop.xlane.xlu0 %889
  %891 = vadd.xlane.f32.xlu0 %v861
  %v892 = vpop.xlane.xlu0 %891
  %893 = vadd.xlane.f32.xlu0 %v862
  %v894 = vpop.xlane.xlu0 %893
  %v895 = vadd.f32 %v746, %v864
  %v896 = vadd.f32 %v747, %v866
  %v897 = vadd.f32 %v748, %v868
  %v898 = vadd.f32 %v749, %v870
  %v899 = vadd.f32 %v750, %v872
  %v900 = vadd.f32 %v751, %v874
  %v901 = vadd.f32 %v752, %v876
  %v902 = vadd.f32 %v753, %v878
  %v903 = vadd.f32 %v754, %v880
  %v904 = vadd.f32 %v755, %v882
  %v905 = vadd.f32 %v756, %v884
  %v906 = vadd.f32 %v757, %v886
  %v907 = vadd.f32 %v758, %v888
  %v908 = vadd.f32 %v759, %v890
  %v909 = vadd.f32 %v760, %v892
  %v910 = vadd.f32 %v761, %v894
  %911 = vst.msk [vmem:[#allocation4] sm:$0xff] %vm713, %v895
  %912 = vst.msk [vmem:[#allocation4 + $0x8] sm:$0xff] %vm713, %v896
  %913 = vst.msk [vmem:[#allocation4 + $0x10] sm:$0xff] %vm713, %v897
  %914 = vst.msk [vmem:[#allocation4 + $0x18] sm:$0xff] %vm713, %v898
  %915 = vst.msk [vmem:[#allocation4 + $0x20] sm:$0xff] %vm713, %v899
  %916 = vst.msk [vmem:[#allocation4 + $0x28] sm:$0xff] %vm713, %v900
  %917 = vst.msk [vmem:[#allocation4 + $0x30] sm:$0xff] %vm713, %v901
  %918 = vst.msk [vmem:[#allocation4 + $0x38] sm:$0xff] %vm713, %v902
  %919 = vst.msk [vmem:[#allocation4 + $0x40] sm:$0xff] %vm713, %v903
  %920 = vst.msk [vmem:[#allocation4 + $0x48] sm:$0xff] %vm713, %v904
  %921 = vst.msk [vmem:[#allocation4 + $0x50] sm:$0xff] %vm713, %v905
  %922 = vst.msk [vmem:[#allocation4 + $0x58] sm:$0xff] %vm713, %v906
  %923 = vst.msk [vmem:[#allocation4 + $0x60] sm:$0xff] %vm713, %v907
  %924 = vst.msk [vmem:[#allocation4 + $0x68] sm:$0xff] %vm713, %v908
  %925 = vst.msk [vmem:[#allocation4 + $0x70] sm:$0xff] %vm713, %v909
  %926 = vst.msk [vmem:[#allocation4 + $0x78] sm:$0xff] %vm713, %v910
  // Predicated region
  $region30: #{tpu_custom_call.1} parent=0 // pred_check
    %p927 = pneg %p24
  $region31: #{tpu_custom_call.1} parent=0 // pred_check_branch
    %929 = sbr.rel (%p927) target = $region33
  $region32: #{tpu_custom_call.1} parent=0 // pred_region
    %v930 = vld [vmem:[%s4] sm:$0xff]
    %v931 = vld [vmem:[%s4 + $0x8] sm:$0xff]
    %v932 = vld [vmem:[%s4 + $0x10] sm:$0xff]
    %v933 = vld [vmem:[%s4 + $0x18] sm:$0xff]
    %v934 = vld [vmem:[%s4 + $0x20] sm:$0xff]
    %v935 = vld [vmem:[%s4 + $0x28] sm:$0xff]
    %v936 = vld [vmem:[%s4 + $0x30] sm:$0xff]
    %v937 = vld [vmem:[%s4 + $0x38] sm:$0xff]
    %v938 = vld [vmem:[%s4 + $0x40] sm:$0xff]
    %v939 = vld [vmem:[%s4 + $0x48] sm:$0xff]
    %v940 = vld [vmem:[%s4 + $0x50] sm:$0xff]
    %v941 = vld [vmem:[%s4 + $0x58] sm:$0xff]
    %v942 = vld [vmem:[%s4 + $0x60] sm:$0xff]
    %v943 = vld [vmem:[%s4 + $0x68] sm:$0xff]
    %v944 = vld [vmem:[%s4 + $0x70] sm:$0xff]
    %v945 = vld [vmem:[%s4 + $0x78] sm:$0xff]
    %vm946 = vcmp.lt.f32.partialorder %v930, 1e-06
    %vm947 = vcmp.lt.f32.partialorder %v931, 1e-06
    %vm948 = vcmp.lt.f32.partialorder %v932, 1e-06
    %vm949 = vcmp.lt.f32.partialorder %v933, 1e-06
    %vm950 = vcmp.lt.f32.partialorder %v934, 1e-06
    %vm951 = vcmp.lt.f32.partialorder %v935, 1e-06
    %vm952 = vcmp.lt.f32.partialorder %v936, 1e-06
    %vm953 = vcmp.lt.f32.partialorder %v937, 1e-06
    %vm954 = vcmp.lt.f32.partialorder %v938, 1e-06
    %vm955 = vcmp.lt.f32.partialorder %v939, 1e-06
    %vm956 = vcmp.lt.f32.partialorder %v940, 1e-06
    %vm957 = vcmp.lt.f32.partialorder %v941, 1e-06
    %vm958 = vcmp.lt.f32.partialorder %v942, 1e-06
    %vm959 = vcmp.lt.f32.partialorder %v943, 1e-06
    %vm960 = vcmp.lt.f32.partialorder %v944, 1e-06
    %vm961 = vcmp.lt.f32.partialorder %v945, 1e-06
    %v962 = vsel %vm946, 1.0, %v930
    %v963 = vsel %vm947, 1.0, %v931
    %v964 = vsel %vm948, 1.0, %v932
    %v965 = vsel %vm949, 1.0, %v933
    %v966 = vsel %vm950, 1.0, %v934
    %v967 = vsel %vm951, 1.0, %v935
    %v968 = vsel %vm952, 1.0, %v936
    %v969 = vsel %vm953, 1.0, %v937
    %v970 = vsel %vm954, 1.0, %v938
    %v971 = vsel %vm955, 1.0, %v939
    %v972 = vsel %vm956, 1.0, %v940
    %v973 = vsel %vm957, 1.0, %v941
    %v974 = vsel %vm958, 1.0, %v942
    %v975 = vsel %vm959, 1.0, %v943
    %v976 = vsel %vm960, 1.0, %v944
    %v977 = vsel %vm961, 1.0, %v945
    %v978 = vld [vmem:[#allocation2] sm:$0xff]
    %v979 = vld [vmem:[#allocation2 + $0x8] sm:$0xff]
    %v980 = vld [vmem:[#allocation2 + $0x10] sm:$0xff]
    %v981 = vld [vmem:[#allocation2 + $0x18] sm:$0xff]
    %v982 = vld [vmem:[#allocation2 + $0x20] sm:$0xff]
    %v983 = vld [vmem:[#allocation2 + $0x28] sm:$0xff]
    %v984 = vld [vmem:[#allocation2 + $0x30] sm:$0xff]
    %v985 = vld [vmem:[#allocation2 + $0x38] sm:$0xff]
    %v986 = vld [vmem:[#allocation2 + $0x40] sm:$0xff]
    %v987 = vld [vmem:[#allocation2 + $0x48] sm:$0xff]
    %v988 = vld [vmem:[#allocation2 + $0x50] sm:$0xff]
    %v989 = vld [vmem:[#allocation2 + $0x58] sm:$0xff]
    %v990 = vld [vmem:[#allocation2 + $0x60] sm:$0xff]
    %v991 = vld [vmem:[#allocation2 + $0x68] sm:$0xff]
    %v992 = vld [vmem:[#allocation2 + $0x70] sm:$0xff]
    %v993 = vld [vmem:[#allocation2 + $0x78] sm:$0xff]
    %v994 = vld [vmem:[#allocation3] sm:$0xff]
    %v995 = vld [vmem:[#allocation3 + $0x8] sm:$0xff]
    %v996 = vld [vmem:[#allocation3 + $0x10] sm:$0xff]
    %v997 = vld [vmem:[#allocation3 + $0x18] sm:$0xff]
    %v998 = vld [vmem:[#allocation3 + $0x20] sm:$0xff]
    %v999 = vld [vmem:[#allocation3 + $0x28] sm:$0xff]
    %v1000 = vld [vmem:[#allocation3 + $0x30] sm:$0xff]
    %v1001 = vld [vmem:[#allocation3 + $0x38] sm:$0xff]
    %v1002 = vld [vmem:[#allocation3 + $0x40] sm:$0xff]
    %v1003 = vld [vmem:[#allocation3 + $0x48] sm:$0xff]
    %v1004 = vld [vmem:[#allocation3 + $0x50] sm:$0xff]
    %v1005 = vld [vmem:[#allocation3 + $0x58] sm:$0xff]
    %v1006 = vld [vmem:[#allocation3 + $0x60] sm:$0xff]
    %v1007 = vld [vmem:[#allocation3 + $0x68] sm:$0xff]
    %v1008 = vld [vmem:[#allocation3 + $0x70] sm:$0xff]
    %v1009 = vld [vmem:[#allocation3 + $0x78] sm:$0xff]
    %v1010 = vlog2.pop %v994
    %v1011 = vmul.f32 %v1010, 0.6931472
    %v1012 = vlog2.pop %v995
    %v1013 = vmul.f32 %v1012, 0.6931472
    %v1014 = vlog2.pop %v996
    %v1015 = vmul.f32 %v1014, 0.6931472
    %v1016 = vlog2.pop %v997
    %v1017 = vmul.f32 %v1016, 0.6931472
    %v1018 = vlog2.pop %v998
    %v1019 = vmul.f32 %v1018, 0.6931472
    %v1020 = vlog2.pop %v999
    %v1021 = vmul.f32 %v1020, 0.6931472
    %v1022 = vlog2.pop %v1000
    %v1023 = vmul.f32 %v1022, 0.6931472
    %v1024 = vlog2.pop %v1001
    %v1025 = vmul.f32 %v1024, 0.6931472
    %v1026 = vlog2.pop %v1002
    %v1027 = vmul.f32 %v1026, 0.6931472
    %v1028 = vlog2.pop %v1003
    %v1029 = vmul.f32 %v1028, 0.6931472
    %v1030 = vlog2.pop %v1004
    %v1031 = vmul.f32 %v1030, 0.6931472
    %v1032 = vlog2.pop %v1005
    %v1033 = vmul.f32 %v1032, 0.6931472
    %v1034 = vlog2.pop %v1006
    %v1035 = vmul.f32 %v1034, 0.6931472
    %v1036 = vlog2.pop %v1007
    %v1037 = vmul.f32 %v1036, 0.6931472
    %v1038 = vlog2.pop %v1008
    %v1039 = vmul.f32 %v1038, 0.6931472
    %v1040 = vlog2.pop %v1009
    %v1041 = vmul.f32 %v1040, 0.6931472
    %v1042 = vadd.f32 %v978, %v1011
    %v1043 = vadd.f32 %v979, %v1013
    %v1044 = vadd.f32 %v980, %v1015
    %v1045 = vadd.f32 %v981, %v1017
    %v1046 = vadd.f32 %v982, %v1019
    %v1047 = vadd.f32 %v983, %v1021
    %v1048 = vadd.f32 %v984, %v1023
    %v1049 = vadd.f32 %v985, %v1025
    %v1050 = vadd.f32 %v986, %v1027
    %v1051 = vadd.f32 %v987, %v1029
    %v1052 = vadd.f32 %v988, %v1031
    %v1053 = vadd.f32 %v989, %v1033
    %v1054 = vadd.f32 %v990, %v1035
    %v1055 = vadd.f32 %v991, %v1037
    %v1056 = vadd.f32 %v992, %v1039
    %v1057 = vadd.f32 %v993, %v1041
    %v1058 = vld [vmem:[#allocation4] sm:$0xff]
    %v1059 = vld [vmem:[#allocation4 + $0x8] sm:$0xff]
    %v1060 = vld [vmem:[#allocation4 + $0x10] sm:$0xff]
    %v1061 = vld [vmem:[#allocation4 + $0x18] sm:$0xff]
    %v1062 = vld [vmem:[#allocation4 + $0x20] sm:$0xff]
    %v1063 = vld [vmem:[#allocation4 + $0x28] sm:$0xff]
    %v1064 = vld [vmem:[#allocation4 + $0x30] sm:$0xff]
    %v1065 = vld [vmem:[#allocation4 + $0x38] sm:$0xff]
    %v1066 = vld [vmem:[#allocation4 + $0x40] sm:$0xff]
    %v1067 = vld [vmem:[#allocation4 + $0x48] sm:$0xff]
    %v1068 = vld [vmem:[#allocation4 + $0x50] sm:$0xff]
    %v1069 = vld [vmem:[#allocation4 + $0x58] sm:$0xff]
    %v1070 = vld [vmem:[#allocation4 + $0x60] sm:$0xff]
    %v1071 = vld [vmem:[#allocation4 + $0x68] sm:$0xff]
    %v1072 = vld [vmem:[#allocation4 + $0x70] sm:$0xff]
    %v1073 = vld [vmem:[#allocation4 + $0x78] sm:$0xff]
    %v1074 = vld [vmem:[%s5] sm:$0xff]
    %v1075 = vld [vmem:[%s5 + $0x8] sm:$0xff]
    %v1076 = vld [vmem:[%s5 + $0x10] sm:$0xff]
    %v1077 = vld [vmem:[%s5 + $0x18] sm:$0xff]
    %v1078 = vld [vmem:[%s5 + $0x20] sm:$0xff]
    %v1079 = vld [vmem:[%s5 + $0x28] sm:$0xff]
    %v1080 = vld [vmem:[%s5 + $0x30] sm:$0xff]
    %v1081 = vld [vmem:[%s5 + $0x38] sm:$0xff]
    %v1082 = vld [vmem:[%s5 + $0x40] sm:$0xff]
    %v1083 = vld [vmem:[%s5 + $0x48] sm:$0xff]
    %v1084 = vld [vmem:[%s5 + $0x50] sm:$0xff]
    %v1085 = vld [vmem:[%s5 + $0x58] sm:$0xff]
    %v1086 = vld [vmem:[%s5 + $0x60] sm:$0xff]
    %v1087 = vld [vmem:[%s5 + $0x68] sm:$0xff]
    %v1088 = vld [vmem:[%s5 + $0x70] sm:$0xff]
    %v1089 = vld [vmem:[%s5 + $0x78] sm:$0xff]
    %v1090 = vsub.f32 %v1058, %v1074
    %v1091 = vsub.f32 %v1059, %v1075
    %v1092 = vsub.f32 %v1060, %v1076
    %v1093 = vsub.f32 %v1061, %v1077
    %v1094 = vsub.f32 %v1062, %v1078
    %v1095 = vsub.f32 %v1063, %v1079
    %v1096 = vsub.f32 %v1064, %v1080
    %v1097 = vsub.f32 %v1065, %v1081
    %v1098 = vsub.f32 %v1066, %v1082
    %v1099 = vsub.f32 %v1067, %v1083
    %v1100 = vsub.f32 %v1068, %v1084
    %v1101 = vsub.f32 %v1069, %v1085
    %v1102 = vsub.f32 %v1070, %v1086
    %v1103 = vsub.f32 %v1071, %v1087
    %v1104 = vsub.f32 %v1072, %v1088
    %v1105 = vsub.f32 %v1073, %v1089
    %v1106 = vmul.f32 %v930, %v1042
    %v1107 = vmul.f32 %v931, %v1043
    %v1108 = vmul.f32 %v932, %v1044
    %v1109 = vmul.f32 %v933, %v1045
    %v1110 = vmul.f32 %v934, %v1046
    %v1111 = vmul.f32 %v935, %v1047
    %v1112 = vmul.f32 %v936, %v1048
    %v1113 = vmul.f32 %v937, %v1049
    %v1114 = vmul.f32 %v938, %v1050
    %v1115 = vmul.f32 %v939, %v1051
    %v1116 = vmul.f32 %v940, %v1052
    %v1117 = vmul.f32 %v941, %v1053
    %v1118 = vmul.f32 %v942, %v1054
    %v1119 = vmul.f32 %v943, %v1055
    %v1120 = vmul.f32 %v944, %v1056
    %v1121 = vmul.f32 %v945, %v1057
    %v1122 = vsub.f32 %v1090, %v1106
    %v1123 = vsub.f32 %v1091, %v1107
    %v1124 = vsub.f32 %v1092, %v1108
    %v1125 = vsub.f32 %v1093, %v1109
    %v1126 = vsub.f32 %v1094, %v1110
    %v1127 = vsub.f32 %v1095, %v1111
    %v1128 = vsub.f32 %v1096, %v1112
    %v1129 = vsub.f32 %v1097, %v1113
    %v1130 = vsub.f32 %v1098, %v1114
    %v1131 = vsub.f32 %v1099, %v1115
    %v1132 = vsub.f32 %v1100, %v1116
    %v1133 = vsub.f32 %v1101, %v1117
    %v1134 = vsub.f32 %v1102, %v1118
    %v1135 = vsub.f32 %v1103, %v1119
    %v1136 = vsub.f32 %v1104, %v1120
    %v1137 = vsub.f32 %v1105, %v1121
    %v1138 = vrcp.pop %v962
    %v1139 = vmul.f32 %v1122, %v1138
    %v1140 = vrcp.pop %v963
    %v1141 = vmul.f32 %v1123, %v1140
    %v1142 = vrcp.pop %v964
    %v1143 = vmul.f32 %v1124, %v1142
    %v1144 = vrcp.pop %v965
    %v1145 = vmul.f32 %v1125, %v1144
    %v1146 = vrcp.pop %v966
    %v1147 = vmul.f32 %v1126, %v1146
    %v1148 = vrcp.pop %v967
    %v1149 = vmul.f32 %v1127, %v1148
    %v1150 = vrcp.pop %v968
    %v1151 = vmul.f32 %v1128, %v1150
    %v1152 = vrcp.pop %v969
    %v1153 = vmul.f32 %v1129, %v1152
    %v1154 = vrcp.pop %v970
    %v1155 = vmul.f32 %v1130, %v1154
    %v1156 = vrcp.pop %v971
    %v1157 = vmul.f32 %v1131, %v1156
    %v1158 = vrcp.pop %v972
    %v1159 = vmul.f32 %v1132, %v1158
    %v1160 = vrcp.pop %v973
    %v1161 = vmul.f32 %v1133, %v1160
    %v1162 = vrcp.pop %v974
    %v1163 = vmul.f32 %v1134, %v1162
    %v1164 = vrcp.pop %v975
    %v1165 = vmul.f32 %v1135, %v1164
    %v1166 = vrcp.pop %v976
    %v1167 = vmul.f32 %v1136, %v1166
    %v1168 = vrcp.pop %v977
    %v1169 = vmul.f32 %v1137, %v1168
    %v1170 = vmul.f32 %v1139, -1.0
    %v1171 = vmul.f32 %v1141, -1.0
    %v1172 = vmul.f32 %v1143, -1.0
    %v1173 = vmul.f32 %v1145, -1.0
    %v1174 = vmul.f32 %v1147, -1.0
    %v1175 = vmul.f32 %v1149, -1.0
    %v1176 = vmul.f32 %v1151, -1.0
    %v1177 = vmul.f32 %v1153, -1.0
    %v1178 = vmul.f32 %v1155, -1.0
    %v1179 = vmul.f32 %v1157, -1.0
    %v1180 = vmul.f32 %v1159, -1.0
    %v1181 = vmul.f32 %v1161, -1.0
    %v1182 = vmul.f32 %v1163, -1.0
    %v1183 = vmul.f32 %v1165, -1.0
    %v1184 = vmul.f32 %v1167, -1.0
    %v1185 = vmul.f32 %v1169, -1.0
    %1186 = vst.msk [vmem:[%s6] sm:$0xff] %vm713, %v1170
    %1187 = vst.msk [vmem:[%s6 + $0x8] sm:$0xff] %vm713, %v1171
    %1188 = vst.msk [vmem:[%s6 + $0x10] sm:$0xff] %vm713, %v1172
    %1189 = vst.msk [vmem:[%s6 + $0x18] sm:$0xff] %vm713, %v1173
    %1190 = vst.msk [vmem:[%s6 + $0x20] sm:$0xff] %vm713, %v1174
    %1191 = vst.msk [vmem:[%s6 + $0x28] sm:$0xff] %vm713, %v1175
    %1192 = vst.msk [vmem:[%s6 + $0x30] sm:$0xff] %vm713, %v1176
    %1193 = vst.msk [vmem:[%s6 + $0x38] sm:$0xff] %vm713, %v1177
    %1194 = vst.msk [vmem:[%s6 + $0x40] sm:$0xff] %vm713, %v1178
    %1195 = vst.msk [vmem:[%s6 + $0x48] sm:$0xff] %vm713, %v1179
    %1196 = vst.msk [vmem:[%s6 + $0x50] sm:$0xff] %vm713, %v1180
    %1197 = vst.msk [vmem:[%s6 + $0x58] sm:$0xff] %vm713, %v1181
    %1198 = vst.msk [vmem:[%s6 + $0x60] sm:$0xff] %vm713, %v1182
    %1199 = vst.msk [vmem:[%s6 + $0x68] sm:$0xff] %vm713, %v1183
    %1200 = vst.msk [vmem:[%s6 + $0x70] sm:$0xff] %vm713, %v1184
    %1201 = vst.msk [vmem:[%s6 + $0x78] sm:$0xff] %vm713, %v1185
  $region33: #{tpu_custom_call.1} parent=0 // pred_fallthru
    _
  // Predicated region
  $region34: #{tpu_custom_call.1} parent=0 // pred_check
    _
  $region35: #{tpu_custom_call.1} parent=0 // pred_check_branch
    %1203 = sbr.rel (0) target = $region37
  $region36: #{tpu_custom_call.1} parent=0 // pred_region
    _
  $region37: #{tpu_custom_call.1} parent=0 // pred_fallthru
    _
  // Predicated region
  $region38: #{tpu_custom_call.1} parent=0 // pred_check
    _
  $region39: #{tpu_custom_call.1} parent=0 // pred_check_branch
    %1205 = sbr.rel (0) target = $region41
  $region40: #{tpu_custom_call.1} parent=0 // pred_region
    _
  $region41: #{tpu_custom_call.1} parent=0 // pred_fallthru
    _

</llo_original>
